<compile_context>
chip_gen: v7x
topology: tpu7x:2x2x1
jax: 0.10.0
libtpu: 0.0.40
codegen_flags: <defaults>
</compile_context>

<pallas_src>
import jax
import jax.numpy as jnp
from jax.experimental import pallas as pl
from jax.experimental.pallas import tpu as pltpu


class NaNExceptionCritic(Exception):
    pass


def _round_up(v, m):
    return ((v + m - 1) // m) * m


def _critic_kernel(x_ref, w1_ref, b1_ref, w2r_ref, b2_ref, o_ref):
    # fc1: (TILE_B, D) @ (D, H_pad) on the MXU with f32 accumulation.
    h = jnp.dot(x_ref[...], w1_ref[...], preferred_element_type=jnp.float32)
    h = jnp.maximum(h + b1_ref[...], 0.0)                     # bias + ReLU (VPU)
    # fc2 (single output unit), lane-dense: weight the hidden units on the VPU,
    # transpose so the batch dim is lane-major (rides the otherwise idle XLU),
    # then reduce over the hidden (sublane) axis.  No N=1 MXU matmul.
    hw = h * w2r_ref[...]                                     # (TILE_B, H_pad)
    v = jnp.sum(jnp.transpose(hw), axis=0, keepdims=True)     # (1, TILE_B)
    v = v + b2_ref[...]
    o_ref[...] = v[None].astype(o_ref.dtype)                  # (1, 1, TILE_B) store


def _vmem_limit_bytes():
    """Gate the scoped-VMEM request on the chip's physical VMEM (item 6)."""
    cap = None
    try:
        cap = getattr(pltpu.get_tpu_info(), "vmem_capacity_bytes", None)
    except Exception:
        cap = None
    if cap is None:
        return 32 * 1024 * 1024
    if cap >= 96 * 1024 * 1024:        # v5e / v6e: 128 MiB physical -> headroom
        return 64 * 1024 * 1024
    return 48 * 1024 * 1024            # v7x: 64 MiB physical -> leave headroom


def _pick_tile_b(batch, input_dim, hidden_pad, x_itemsize, w_itemsize):
    """Batch tile (multiple of 128) sized against a VMEM budget (items 1/2/4)."""
    d_pad = _round_up(max(input_dim, 1), 128)          # lane padding of the x tile
    per_row = d_pad * x_itemsize
    # Weights are double-buffered by default even with a constant index_map;
    # subtract that footprint from the per-x-buffer budget (item 4).
    weight_bytes = 2 * (d_pad * hidden_pad * w_itemsize + 3 * 8 * hidden_pad * 4)
    budget = max((4 << 20) - weight_bytes, 1 << 19)    # >= 512 KiB floor
    tile = min(8192, max(128, budget // per_row))      # raised cap (item 1)
    tile = max(128, (int(tile) // 128) * 128)
    # Keep >= 2 grid steps when possible so v7x's two TensorCores both get work.
    if batch > 128:
        tile = min(tile, _round_up(-(-batch // 2), 128))
    return min(tile, _round_up(batch, 128))


def critic_forward(x, w1, b1, w2, b2, *, tile_b=None, use_bf16=False,
                   min_pallas_batch=512):
    """Returns (values (B,1) float32, nan_or_inf_flag (bool scalar))."""
    x = jnp.asarray(x)
    w1 = jnp.asarray(w1, jnp.float32)
    b1 = jnp.asarray(b1, jnp.float32)
    w2 = jnp.asarray(w2, jnp.float32)
    b2 = jnp.asarray(b2, jnp.float32)
    B, D = x.shape
    H = w1.shape[1]                                    # 64

    # Tiny-batch fast path (item 7): the module's native use case (single
    # states / short rollouts) is cheaper as plain jnp that XLA fuses.
    if B < min_pallas_batch and tile_b is None:
        h = jnp.maximum(jnp.dot(x.astype(jnp.float32), w1) + b1, 0.0)
        out = (jnp.dot(h, w2) + b2.reshape(1, -1)).astype(jnp.float32)
        bad = jnp.any(jnp.isnan(out) | jnp.isinf(out))
        return out, bad

    # Pad the hidden dim to 128 lanes (zero columns contribute zero to fc2):
    # h is lane-padded in VMEM anyway, and it keeps the in-kernel transpose in
    # the canonical (mult-of-8, mult-of-128) regime.
    H_pad = _round_up(H, 128)
    x_mm = x.astype(jnp.bfloat16) if use_bf16 else x.astype(jnp.float32)
    w1_p = jnp.pad(w1, ((0, 0), (0, H_pad - H)))
    w1_mm = w1_p.astype(jnp.bfloat16) if use_bf16 else w1_p
    b1_p = jnp.pad(b1, (0, H_pad - H)).reshape(1, H_pad).astype(jnp.float32)
    w2_row = jnp.pad(w2.reshape(-1), (0, H_pad - H)).reshape(1, H_pad).astype(jnp.float32)
    b2_2d = b2.reshape(1, 1).astype(jnp.float32)

    if tile_b is None:
        tile_b = _pick_tile_b(B, D, H_pad, x_mm.dtype.itemsize, w1_mm.dtype.itemsize)
    tile_b = max(128, (int(tile_b) // 128) * 128)
    tile_b = min(tile_b, _round_up(B, 128))
    num_tiles = pl.cdiv(B, tile_b)                     # edge block may be partial

    cost = pl.CostEstimate(
        flops=2 * B * D * H_pad + 4 * B * H_pad,
        transcendentals=0,
        bytes_accessed=int(x_mm.dtype.itemsize * B * D             # x (streamed)
                           + w1_mm.dtype.itemsize * D * H_pad      # w1 (once)
                           + 4 * (2 * H_pad + 1)                   # b1, w2 row, b2
                           + 4 * num_tiles * tile_b),               # output
    )

    out_tiles = pl.pallas_call(
        _critic_kernel,
        out_shape=jax.ShapeDtypeStruct((num_tiles, 1, tile_b), jnp.float32),
        grid=(num_tiles,),
        in_specs=[
            pl.BlockSpec((tile_b, D), lambda i: (i, 0)),     # x: streamed batch tiles
            pl.BlockSpec((D, H_pad), lambda i: (0, 0)),      # w1: VMEM-resident
            pl.BlockSpec((1, H_pad), lambda i: (0, 0)),      # b1: VMEM-resident
            pl.BlockSpec((1, H_pad), lambda i: (0, 0)),      # w2 row: VMEM-resident
            pl.BlockSpec((1, 1), lambda i: (0, 0)),          # b2: VMEM-resident
        ],
        # Lane-dense output: (1, 1, TILE_B) block -> unmasked full-lane stores.
        out_specs=pl.BlockSpec((1, 1, tile_b), lambda i: (i, 0, 0)),
        compiler_params=pltpu.CompilerParams(
            dimension_semantics=("parallel",),       # megacore sharding on v7x
            vmem_limit_bytes=_vmem_limit_bytes(),
        ),
        cost_estimate=cost,
    )(x_mm, w1_mm, b1_p, w2_row, b2_2d)

    # Un-tile: row b lives at out_tiles[b // tile_b, 0, b % tile_b]; padded rows
    # of the ragged last tile are dropped here, before the NaN/Inf check.
    out = out_tiles.reshape(num_tiles * tile_b)[:B].reshape(B, 1)

    # NaN/Inf detection on the final output — same tensor the PyTorch module
    # inspects before raising NaNExceptionCritic (raise itself is host-side).
    bad = jnp.any(jnp.isnan(out) | jnp.isinf(out))
    return out, bad


def init_critic_params(key, input_dim, hidden=64, out_dim=1):
    # Mimic torch.nn.Linear default init: U(-1/sqrt(fan_in), 1/sqrt(fan_in))
    k1, k2, k3, k4 = jax.random.split(key, 4)
    bound1 = 1.0 / jnp.sqrt(jnp.array(input_dim, jnp.float32))
    bound2 = 1.0 / jnp.sqrt(jnp.array(hidden, jnp.float32))
    w1 = jax.random.uniform(k1, (input_dim, hidden), jnp.float32, -bound1, bound1)
    b1 = jax.random.uniform(k2, (hidden,), jnp.float32, -bound1, bound1)
    w2 = jax.random.uniform(k3, (hidden, out_dim), jnp.float32, -bound2, bound2)
    b2 = jax.random.uniform(k4, (out_dim,), jnp.float32, -bound2, bound2)
    return w1, b1, w2, b2


# TODO(synk): Adam optimizer / update() / learn() / reset() are training-side
# PyTorch logic with no forward-pass Pallas equivalent; not implemented here.

if __name__ == "__main__":
    key = jax.random.PRNGKey(0)
    kx, kp, k2x, k2p, k3x, k3p = jax.random.split(key, 6)

    def reference(x, w1, b1, w2, b2):
        return jnp.maximum(x @ w1 + b1, 0.0) @ w2 + b2

    # 1) Module-native small shape: batch=8, input_dim=32 (jnp fast path).
    batch, input_dim = 8, 32
    x = jax.random.normal(kx, (batch, input_dim), jnp.float32)
    p1 = init_critic_params(kp, input_dim)
    out, bad = critic_forward(x, *p1)
    out = jax.block_until_ready(out)
    if bool(jax.block_until_ready(bad)):
        raise NaNExceptionCritic("Les couches cachées critic renvoie nan ou inf")
    assert out.shape == (batch, 1)
    assert jnp.allclose(out, reference(x, *p1), atol=1e-4, rtol=1e-4)

    # 2) Pallas path: large batch, auto tile (clamped to >= 2 grid steps for
    #    v7x megacore), lane-dense output.
    batch2, input_dim2 = 2048, 32
    x2 = jax.random.normal(k2x, (batch2, input_dim2), jnp.float32)
    p2 = init_critic_params(k2p, input_dim2)
    out2, bad2 = critic_forward(x2, *p2)
    out2 = jax.block_until_ready(out2)
    if bool(jax.block_until_ready(bad2)):
        raise NaNExceptionCritic("Les couches cachées critic renvoie nan ou inf")
    assert out2.shape == (batch2, 1)
    assert jnp.allclose(out2, reference(x2, *p2), atol=1e-3, rtol=1e-3)

    # 3) Pallas path: ragged batch / partial last tile, forced tile size.
    batch3, input_dim3 = 1300, 40
    x3 = jax.random.normal(k3x, (batch3, input_dim3), jnp.float32)
    p3 = init_critic_params(k3p, input_dim3)
    out3, bad3 = critic_forward(x3, *p3, tile_b=512)   # grid = cdiv(1300,512) = 3
    out3 = jax.block_until_ready(out3)
    if bool(jax.block_until_ready(bad3)):
        raise NaNExceptionCritic("Les couches cachées critic renvoie nan ou inf")
    assert out3.shape == (batch3, 1)
    assert jnp.allclose(out3, reference(x3, *p3), atol=1e-3, rtol=1e-3)

    # 4) Optional bf16 streaming of x / w1 (halves the dominant HBM traffic).
    out4, bad4 = critic_forward(x2, *p2, use_bf16=True)
    out4 = jax.block_until_ready(out4)
    if bool(jax.block_until_ready(bad4)):
        raise NaNExceptionCritic("Les couches cachées critic renvoie nan ou inf")
    assert jnp.allclose(out4, reference(x2, *p2), atol=5e-2, rtol=5e-2)

    print("KERNEL_OK")
</pallas_src>

<mosaic_0001>
module attributes {stable_mosaic.version = 11 : i64} {
  func.func @_critic_kernel(%arg0: i32, %arg1: memref<1024x32xf32, #tpu.memory_space<vmem>>, %arg2: memref<32x128xf32, #tpu.memory_space<vmem>>, %arg3: memref<1x128xf32, #tpu.memory_space<vmem>>, %arg4: memref<1x128xf32, #tpu.memory_space<vmem>>, %arg5: memref<1x1xf32, #tpu.memory_space<vmem>>, %arg6: memref<1x1x1024xf32, #tpu.memory_space<vmem>>) attributes {dimension_semantics = [#tpu.dimension_semantics<parallel>], iteration_bounds = array<i64: 2>, scalar_prefetch = 0 : i64, scratch_operands = 0 : i64, tpu.core_type = #tpu.core_type<tc>, window_params = [{transform_indices = @transform_0, window_bounds = array<i64: 1024, 32>}, {pipeline_mode = #tpu.pipeline_mode<synchronous>, transform_indices = @transform_1, window_bounds = array<i64: 32, 128>}, {pipeline_mode = #tpu.pipeline_mode<synchronous>, transform_indices = @transform_2, window_bounds = array<i64: 1, 128>}, {pipeline_mode = #tpu.pipeline_mode<synchronous>, transform_indices = @transform_3, window_bounds = array<i64: 1, 128>}, {pipeline_mode = #tpu.pipeline_mode<synchronous>, transform_indices = @transform_4, window_bounds = array<i64: 1, 1>}, {transform_indices = @transform_5, window_bounds = array<i64: 1, 1, 1024>}]} {
    %c0 = arith.constant 0 : index
    %c0_0 = arith.constant 0 : index
    %0 = vector.load %arg1[%c0, %c0_0] : memref<1024x32xf32, #tpu.memory_space<vmem>>, vector<1024x32xf32>
    %c0_1 = arith.constant 0 : index
    %c0_2 = arith.constant 0 : index
    %1 = vector.load %arg2[%c0_1, %c0_2] : memref<32x128xf32, #tpu.memory_space<vmem>>, vector<32x128xf32>
    %cst = arith.constant dense<0.000000e+00> : vector<1024x128xf32>
    %2 = tpu.matmul %0, %1, %cst {dimension_numbers = #tpu.dot_dimension_numbers<[1], [0], [0], [1], [0, 0, 1, 1], [], []>} : vector<1024x32xf32>, vector<32x128xf32>, vector<1024x128xf32> -> vector<1024x128xf32>
    %c0_3 = arith.constant 0 : index
    %c0_4 = arith.constant 0 : index
    %3 = vector.load %arg3[%c0_3, %c0_4] : memref<1x128xf32, #tpu.memory_space<vmem>>, vector<1x128xf32>
    %4 = vector.broadcast %3 : vector<1x128xf32> to vector<1024x128xf32>
    %5 = arith.addf %2, %4 : vector<1024x128xf32>
    %cst_5 = arith.constant 0.000000e+00 : f32
    %6 = vector.broadcast %cst_5 : f32 to vector<1024x128xf32>
    %7 = arith.maximumf %5, %6 : vector<1024x128xf32>
    %c0_6 = arith.constant 0 : index
    %c0_7 = arith.constant 0 : index
    %8 = vector.load %arg4[%c0_6, %c0_7] : memref<1x128xf32, #tpu.memory_space<vmem>>, vector<1x128xf32>
    %9 = vector.broadcast %8 : vector<1x128xf32> to vector<1024x128xf32>
    %10 = arith.mulf %7, %9 : vector<1024x128xf32>
    %11 = tpu.transpose %10, [1, 0] : vector<1024x128xf32> -> vector<128x1024xf32>
    %cst_8 = arith.constant dense<0.000000e+00> : vector<1024xf32>
    %12 = vector.multi_reduction <add>, %11, %cst_8 [0] : vector<128x1024xf32> to vector<1024xf32>
    %13 = vector.shape_cast %12 : vector<1024xf32> to vector<1x1024xf32>
    %c0_9 = arith.constant 0 : index
    %c0_10 = arith.constant 0 : index
    %14 = vector.load %arg5[%c0_9, %c0_10] : memref<1x1xf32, #tpu.memory_space<vmem>>, vector<1x1xf32>
    %15 = vector.broadcast %14 : vector<1x1xf32> to vector<1x1024xf32>
    %16 = arith.addf %13, %15 : vector<1x1024xf32>
    %17 = vector.shape_cast %16 : vector<1x1024xf32> to vector<1x1x1024xf32>
    %c0_11 = arith.constant 0 : index
    %c0_12 = arith.constant 0 : index
    %c0_13 = arith.constant 0 : index
    %18 = vector.load %arg6[%c0_11, %c0_12, %c0_13] : memref<1x1x1024xf32, #tpu.memory_space<vmem>>, vector<1x1x1024xf32>
    tpu.vector_store %arg6[%c0_11, %c0_12, %c0_13], %17 {strides = array<i32>} : memref<1x1x1024xf32, #tpu.memory_space<vmem>>, vector<1x1x1024xf32>,
    return
  }
  func.func @transform_0(%arg0: i32) -> (i32, i32) {
    %c0_i32 = arith.constant 0 : i32
    %c0_i32_0 = arith.constant 0 : i32
    return %arg0, %c0_i32 : i32, i32
  }
  func.func @transform_1(%arg0: i32) -> (i32, i32) {
    %c0_i32 = arith.constant 0 : i32
    %c0_i32_0 = arith.constant 0 : i32
    %c0_i32_1 = arith.constant 0 : i32
    return %c0_i32, %c0_i32_0 : i32, i32
  }
  func.func @transform_2(%arg0: i32) -> (i32, i32) {
    %c0_i32 = arith.constant 0 : i32
    %c0_i32_0 = arith.constant 0 : i32
    %c0_i32_1 = arith.constant 0 : i32
    return %c0_i32, %c0_i32_0 : i32, i32
  }
  func.func @transform_3(%arg0: i32) -> (i32, i32) {
    %c0_i32 = arith.constant 0 : i32
    %c0_i32_0 = arith.constant 0 : i32
    %c0_i32_1 = arith.constant 0 : i32
    return %c0_i32, %c0_i32_0 : i32, i32
  }
  func.func @transform_4(%arg0: i32) -> (i32, i32) {
    %c0_i32 = arith.constant 0 : i32
    %c0_i32_0 = arith.constant 0 : i32
    %c0_i32_1 = arith.constant 0 : i32
    return %c0_i32, %c0_i32_0 : i32, i32
  }
  func.func @transform_5(%arg0: i32) -> (i32, i32, i32) {
    %c0_i32 = arith.constant 0 : i32
    %c0_i32_0 = arith.constant 0 : i32
    %c0_i32_1 = arith.constant 0 : i32
    return %arg0, %c0_i32, %c0_i32_0 : i32, i32, i32
  }
}

</mosaic_0001>

<llo_original>
// kernel: tpu_custom_call.1
$region0: #{tpu_custom_call.1}
  #allocation0 [shape = 'u32[]', space=smem, size = 0x4, offset = 0x4, fixed_abs, tag = 'smem constant byte address 0x4 - core index']
  #allocation1 [shape = 'u32[144,128]{1,0:T(1,128)}', space=vmem, size = 0x12000, scoped, tag = 'internal scratch']
  #allocation2 [shape = 'f32[1,1]{1,0:T(1,128)S(1)}', space=vmem, size = 0x200, scoped, tag = 'scoped memory for tpu_custom_call.1']
  %s0 = inlined_call_operand.vmem [shape: f32[2048,32], index: 0, kind: input, shape index: {}]
  %s1 = inlined_call_operand.vmem [shape: f32[32,128], index: 1, kind: input, shape index: {}]
  %s2 = inlined_call_operand.vmem [shape: f32[1,128], index: 2, kind: input, shape index: {}]
  %s3 = inlined_call_operand.vmem [shape: f32[1,128], index: 3, kind: input, shape index: {}]
  %s4 = inlined_call_operand.<no memory space> [shape: f32[1,1], index: 4, kind: input, shape index: {}]
  %s5 = inlined_call_operand.hbm [shape: f32[2,1,1024], index: 5, kind: output, shape index: {}]
  %s6 = sld [smem:[#allocation0]]
  $region53: #{tpu_custom_call.1} parent=0
    _
  %s8 = ssub.s32 1, %s6
  %s9 = scalar_select 0, %s8, %s6
  %v10 = vstv %s4
  %11 = vst [vmem:[#allocation2] sm:$0x1] %v10
  $region1: #{tpu_custom_call.1} parent=0
    #allocation3 [shape = 'u8[8192]{0}', space=vmem, size = 0x2000, scoped, tag = 'output window, operand 0']
    #allocation4 [shape = 's32[2]{0}', space=sflag, size = 0x8, scoped, tag = 'scoped memory for tpu_custom_call.1']
    %12 = vsyncpa [#allocation4], 0
    %s13 = scalar_lea.sflag [#allocation4], 1
    %14 = vsyncpa %s13, 0
    loop: start=0, step=1, limit=4
    $region2: #{tpu_custom_call.1} parent=1 // loop_pre_header
      _
    $region3: #{tpu_custom_call.1} parent=1 // loop_header
      %s16 = sphi 0, %s20
      %p17 = scmp.ge.s32.totalorder %s16, 4
      %s26 = sphi 0, %s28
      %s29 = sphi 0, %s26
      %s30 = sphi 0, %s29
      %s46 = sphi 0, %s30
      %s50 = sphi 0, %s50
      %s52 = sphi 0, %s50
      %s53 = sphi 0, %s52
      %s67 = sphi 0, %s53
      %s71 = sphi 0, %s71
      %s73 = sphi 0, %s71
      %s74 = sphi 0, %s73
      %s88 = sphi 0, %s74
      %s92 = sphi 0, %s92
      %s94 = sphi 0, %s92
      %s95 = sphi 0, %s94
      %s109 = sphi 0, %s95
      %s113 = sphi 0, %s113
      %s115 = sphi 0, %s113
      %s116 = sphi 0, %s115
      %s130 = sphi 0, %s116
      %s136 = sphi 0, %s138
      %s139 = sphi 0, %s136
      %s140 = sphi 0, %s139
      %s156 = sphi 0, %s140
    $region4: #{tpu_custom_call.1} parent=1 // loop_header_branch
      %19 = sbr.rel (%p17) target = $region8
    $region5: #{tpu_custom_call.1} parent=1 // loop_body
      %s21 = ssub.s32 %s16, 1
      %s22 = ssub.s32 %s16, 2
      %s23 = sadd.s32 %s16, 1
      %s24 = ssub.s32 %s16, %s23
      %p25 = scmp.eq.s32.totalorder %s24, 0
      %s27 = sadd.s32 %s26, 1
      %s28 = scalar_select %p25, %s26, %s27
      %p31 = pneg %p25
      %p32 = scmp.eq.s32.totalorder %s16, 1
      %p33 = por %p31, %p32
      %p34 = scmp.ne.s32.totalorder %s26, %s29
      %p35 = scmp.eq.s32.totalorder %s16, 0
      %p36 = por %p34, %p35
      %p37 = scmp.ne.s32.totalorder %s26, %s29
      %p38 = scmp.eq.s32.totalorder %s21, 1
      %p39 = por %p37, %p38
      %p40 = scmp.ne.s32.totalorder %s29, %s30
      %p41 = scmp.eq.s32.totalorder %s21, 0
      %p42 = por %p40, %p41
      %p43 = scmp.ne.s32.totalorder %s29, %s30
      %p44 = scmp.eq.s32.totalorder %s22, 1
      %p45 = por %p43, %p44
      %p47 = scmp.ne.s32.totalorder %s30, %s46
      %p48 = scmp.eq.s32.totalorder %s22, 0
      %p49 = por %p47, %p48
      %s51 = sadd.s32 %s50, 1
      %p54 = scmp.eq.s32.totalorder %s16, 1
      %p55 = scmp.ne.s32.totalorder %s50, %s52
      %p56 = scmp.eq.s32.totalorder %s16, 0
      %p57 = por %p55, %p56
      %p58 = scmp.ne.s32.totalorder %s50, %s52
      %p59 = scmp.eq.s32.totalorder %s21, 1
      %p60 = por %p58, %p59
      %p61 = scmp.ne.s32.totalorder %s52, %s53
      %p62 = scmp.eq.s32.totalorder %s21, 0
      %p63 = por %p61, %p62
      %p64 = scmp.ne.s32.totalorder %s52, %s53
      %p65 = scmp.eq.s32.totalorder %s22, 1
      %p66 = por %p64, %p65
      %p68 = scmp.ne.s32.totalorder %s53, %s67
      %p69 = scmp.eq.s32.totalorder %s22, 0
      %p70 = por %p68, %p69
      %s72 = sadd.s32 %s71, 1
      %p75 = scmp.eq.s32.totalorder %s16, 1
      %p76 = scmp.ne.s32.totalorder %s71, %s73
      %p77 = scmp.eq.s32.totalorder %s16, 0
      %p78 = por %p76, %p77
      %p79 = scmp.ne.s32.totalorder %s71, %s73
      %p80 = scmp.eq.s32.totalorder %s21, 1
      %p81 = por %p79, %p80
      %p82 = scmp.ne.s32.totalorder %s73, %s74
      %p83 = scmp.eq.s32.totalorder %s21, 0
      %p84 = por %p82, %p83
      %p85 = scmp.ne.s32.totalorder %s73, %s74
      %p86 = scmp.eq.s32.totalorder %s22, 1
      %p87 = por %p85, %p86
      %p89 = scmp.ne.s32.totalorder %s74, %s88
      %p90 = scmp.eq.s32.totalorder %s22, 0
      %p91 = por %p89, %p90
      %s93 = sadd.s32 %s92, 1
      %p96 = scmp.eq.s32.totalorder %s16, 1
      %p97 = scmp.ne.s32.totalorder %s92, %s94
      %p98 = scmp.eq.s32.totalorder %s16, 0
      %p99 = por %p97, %p98
      %p100 = scmp.ne.s32.totalorder %s92, %s94
      %p101 = scmp.eq.s32.totalorder %s21, 1
      %p102 = por %p100, %p101
      %p103 = scmp.ne.s32.totalorder %s94, %s95
      %p104 = scmp.eq.s32.totalorder %s21, 0
      %p105 = por %p103, %p104
      %p106 = scmp.ne.s32.totalorder %s94, %s95
      %p107 = scmp.eq.s32.totalorder %s22, 1
      %p108 = por %p106, %p107
      %p110 = scmp.ne.s32.totalorder %s95, %s109
      %p111 = scmp.eq.s32.totalorder %s22, 0
      %p112 = por %p110, %p111
      %s114 = sadd.s32 %s113, 1
      %p117 = scmp.eq.s32.totalorder %s16, 1
      %p118 = scmp.ne.s32.totalorder %s113, %s115
      %p119 = scmp.eq.s32.totalorder %s16, 0
      %p120 = por %p118, %p119
      %p121 = scmp.ne.s32.totalorder %s113, %s115
      %p122 = scmp.eq.s32.totalorder %s21, 1
      %p123 = por %p121, %p122
      %p124 = scmp.ne.s32.totalorder %s115, %s116
      %p125 = scmp.eq.s32.totalorder %s21, 0
      %p126 = por %p124, %p125
      %p127 = scmp.ne.s32.totalorder %s115, %s116
      %p128 = scmp.eq.s32.totalorder %s22, 1
      %p129 = por %p127, %p128
      %p131 = scmp.ne.s32.totalorder %s116, %s130
      %p132 = scmp.eq.s32.totalorder %s22, 0
      %p133 = por %p131, %p132
      %s134 = ssub.s32 %s16, %s23
      %p135 = scmp.eq.s32.totalorder %s134, 0
      %s137 = sadd.s32 %s136, 1
      %s138 = scalar_select %p135, %s136, %s137
      %p141 = pneg %p135
      %p142 = scmp.eq.s32.totalorder %s16, 1
      %p143 = por %p141, %p142
      %p144 = scmp.ne.s32.totalorder %s136, %s139
      %p145 = scmp.eq.s32.totalorder %s16, 0
      %p146 = por %p144, %p145
      %p147 = scmp.ne.s32.totalorder %s136, %s139
      %p148 = scmp.eq.s32.totalorder %s21, 1
      %p149 = por %p147, %p148
      %p150 = scmp.ne.s32.totalorder %s139, %s140
      %p151 = scmp.eq.s32.totalorder %s21, 0
      %p152 = por %p150, %p151
      %p153 = scmp.ne.s32.totalorder %s139, %s140
      %p154 = scmp.eq.s32.totalorder %s22, 1
      %p155 = por %p153, %p154
      %p157 = scmp.ne.s32.totalorder %s140, %s156
      %p158 = scmp.eq.s32.totalorder %s22, 0
      %p159 = por %p157, %p158
      %p160 = scmp.le.s32.totalorder 1, %s16
      %p161 = scmp.lt.s32.totalorder %s16, 3
      %p162 = pnand %p160, %p161
      %p163 = pneg %p162
      // Predicated region
      $region9: #{tpu_custom_call.1} parent=5 // pred_check
        _
      $region10: #{tpu_custom_call.1} parent=5 // pred_check_branch
        %165 = sbr.rel (%p162) target = $region12
      $region11: #{tpu_custom_call.1} parent=5 // pred_region
        %s166 = ssub.s32 %s16, 1
        // Predicated region
        $region13: #{tpu_custom_call.1} parent=11 // pred_check
          %p167 = pneg %p63
        $region14: #{tpu_custom_call.1} parent=11 // pred_check_branch
          %169 = sbr.rel (%p167) target = $region16
        $region15: #{tpu_custom_call.1} parent=11 // pred_region
          _
        $region16: #{tpu_custom_call.1} parent=11 // pred_fallthru
          _
        // Predicated region
        $region17: #{tpu_custom_call.1} parent=11 // pred_check
          %p170 = pneg %p84
        $region18: #{tpu_custom_call.1} parent=11 // pred_check_branch
          %172 = sbr.rel (%p170) target = $region20
        $region19: #{tpu_custom_call.1} parent=11 // pred_region
          _
        $region20: #{tpu_custom_call.1} parent=11 // pred_fallthru
          _
        // Predicated region
        $region21: #{tpu_custom_call.1} parent=11 // pred_check
          %p173 = pneg %p105
        $region22: #{tpu_custom_call.1} parent=11 // pred_check_branch
          %175 = sbr.rel (%p173) target = $region24
        $region23: #{tpu_custom_call.1} parent=11 // pred_region
          _
        $region24: #{tpu_custom_call.1} parent=11 // pred_fallthru
          _
        // Predicated region
        $region25: #{tpu_custom_call.1} parent=11 // pred_check
          %p176 = pneg %p126
        $region26: #{tpu_custom_call.1} parent=11 // pred_check_branch
          %178 = sbr.rel (%p176) target = $region28
        $region27: #{tpu_custom_call.1} parent=11 // pred_region
          _
        $region28: #{tpu_custom_call.1} parent=11 // pred_fallthru
          _
      $region12: #{tpu_custom_call.1} parent=5 // pred_fallthru
        _
      %p179 = scmp.lt.s32.totalorder %s16, 2
      // Predicated region
      $region29: #{tpu_custom_call.1} parent=5 // pred_check
        %p180 = pneg %p179
      $region30: #{tpu_custom_call.1} parent=5 // pred_check_branch
        %182 = sbr.rel (%p180) target = $region32
      $region31: #{tpu_custom_call.1} parent=5 // pred_region
        // Predicated region
        $region33: #{tpu_custom_call.1} parent=31 // pred_check
          %p183 = pneg %p36
        $region34: #{tpu_custom_call.1} parent=31 // pred_check_branch
          %185 = sbr.rel (%p183) target = $region36
        $region35: #{tpu_custom_call.1} parent=31 // pred_region
          %s186 = smul.u32 128, %s16
          %p187 = scmp.lt.s32.totalorder %s186, 255
          %s188 = scalar_select %p187, %s186, 255
          %s189 = smul.addr %s188, 8
          %s190 = scalar_lea.vmem %s0, %s189
          %s191 = smul.u32 128, %s16
        $region36: #{tpu_custom_call.1} parent=31 // pred_fallthru
          _
      $region32: #{tpu_custom_call.1} parent=5 // pred_fallthru
        _
      %p192 = scmp.le.s32.totalorder 1, %s16
      %p193 = scmp.lt.s32.totalorder %s16, 3
      %p194 = pnand %p192, %p193
      %p195 = pneg %p194
      // Predicated region
      $region37: #{tpu_custom_call.1} parent=5 // pred_check
        _
      $region38: #{tpu_custom_call.1} parent=5 // pred_check_branch
        %197 = sbr.rel (%p194) target = $region40
      $region39: #{tpu_custom_call.1} parent=5 // pred_region
        %s198 = ssub.s32 %s16, 1
        %s199 = smul.u32 128, %s21
        %p200 = scmp.lt.s32.totalorder %s199, 255
        %s201 = scalar_select %p200, %s199, 255
        %s202 = smul.addr %s201, 8
        %s203 = scalar_lea.vmem %s0, %s202
        %p204 = pneg %p42
        %p205 = pneg %p39
        %p206 = pneg %p63
        %p207 = pneg %p60
        %p208 = pneg %p84
        %p209 = pneg %p81
        %p210 = pneg %p105
        %p211 = pneg %p102
        %p212 = pneg %p126
        %p213 = pneg %p123
        %p214 = pneg %p152
        %p215 = pneg %p149
        %s216 = sand.u32 %s139, 1
        %s217 = scalar_lea.sflag [#allocation4], %s216
        %s218 = sand.u32 %s139, 1
        %s219 = smul.addr %s218, 8
        %s220 = scalar_lea.vmem [#allocation3], %s219
        %s221 = smul.u32 128, %s21
        %p222 = scmp.lt.s32.totalorder %s221, 255
        %s223 = scalar_select %p222, %s221, 255
        %s224 = smul.addr %s223, 8
        %s225 = scalar_lea.vmem %s0, %s224
        %s226 = smul.u32 128, %s21
        %v227 = vld [vmem:[%s225] sm:$0xff]
        %v228 = vld [vmem:[%s225 + $0x8] sm:$0xff]
        %v229 = vld [vmem:[%s225 + $0x10] sm:$0xff]
        %v230 = vld [vmem:[%s225 + $0x18] sm:$0xff]
        %v231 = vld [vmem:[%s225 + $0x20] sm:$0xff]
        %v232 = vld [vmem:[%s225 + $0x28] sm:$0xff]
        %v233 = vld [vmem:[%s225 + $0x30] sm:$0xff]
        %v234 = vld [vmem:[%s225 + $0x38] sm:$0xff]
        %v235 = vld [vmem:[%s225 + $0x40] sm:$0xff]
        %v236 = vld [vmem:[%s225 + $0x48] sm:$0xff]
        %v237 = vld [vmem:[%s225 + $0x50] sm:$0xff]
        %v238 = vld [vmem:[%s225 + $0x58] sm:$0xff]
        %v239 = vld [vmem:[%s225 + $0x60] sm:$0xff]
        %v240 = vld [vmem:[%s225 + $0x68] sm:$0xff]
        %v241 = vld [vmem:[%s225 + $0x70] sm:$0xff]
        %v242 = vld [vmem:[%s225 + $0x78] sm:$0xff]
        %v243 = vld [vmem:[%s225 + $0x80] sm:$0xff]
        %v244 = vld [vmem:[%s225 + $0x88] sm:$0xff]
        %v245 = vld [vmem:[%s225 + $0x90] sm:$0xff]
        %v246 = vld [vmem:[%s225 + $0x98] sm:$0xff]
        %v247 = vld [vmem:[%s225 + $0xa0] sm:$0xff]
        %v248 = vld [vmem:[%s225 + $0xa8] sm:$0xff]
        %v249 = vld [vmem:[%s225 + $0xb0] sm:$0xff]
        %v250 = vld [vmem:[%s225 + $0xb8] sm:$0xff]
        %v251 = vld [vmem:[%s225 + $0xc0] sm:$0xff]
        %v252 = vld [vmem:[%s225 + $0xc8] sm:$0xff]
        %v253 = vld [vmem:[%s225 + $0xd0] sm:$0xff]
        %v254 = vld [vmem:[%s225 + $0xd8] sm:$0xff]
        %v255 = vld [vmem:[%s225 + $0xe0] sm:$0xff]
        %v256 = vld [vmem:[%s225 + $0xe8] sm:$0xff]
        %v257 = vld [vmem:[%s225 + $0xf0] sm:$0xff]
        %v258 = vld [vmem:[%s225 + $0xf8] sm:$0xff]
        %v259 = vld [vmem:[%s225 + $0x100] sm:$0xff]
        %v260 = vld [vmem:[%s225 + $0x108] sm:$0xff]
        %v261 = vld [vmem:[%s225 + $0x110] sm:$0xff]
        %v262 = vld [vmem:[%s225 + $0x118] sm:$0xff]
        %v263 = vld [vmem:[%s225 + $0x120] sm:$0xff]
        %v264 = vld [vmem:[%s225 + $0x128] sm:$0xff]
        %v265 = vld [vmem:[%s225 + $0x130] sm:$0xff]
        %v266 = vld [vmem:[%s225 + $0x138] sm:$0xff]
        %v267 = vld [vmem:[%s225 + $0x140] sm:$0xff]
        %v268 = vld [vmem:[%s225 + $0x148] sm:$0xff]
        %v269 = vld [vmem:[%s225 + $0x150] sm:$0xff]
        %v270 = vld [vmem:[%s225 + $0x158] sm:$0xff]
        %v271 = vld [vmem:[%s225 + $0x160] sm:$0xff]
        %v272 = vld [vmem:[%s225 + $0x168] sm:$0xff]
        %v273 = vld [vmem:[%s225 + $0x170] sm:$0xff]
        %v274 = vld [vmem:[%s225 + $0x178] sm:$0xff]
        %v275 = vld [vmem:[%s225 + $0x180] sm:$0xff]
        %v276 = vld [vmem:[%s225 + $0x188] sm:$0xff]
        %v277 = vld [vmem:[%s225 + $0x190] sm:$0xff]
        %v278 = vld [vmem:[%s225 + $0x198] sm:$0xff]
        %v279 = vld [vmem:[%s225 + $0x1a0] sm:$0xff]
        %v280 = vld [vmem:[%s225 + $0x1a8] sm:$0xff]
        %v281 = vld [vmem:[%s225 + $0x1b0] sm:$0xff]
        %v282 = vld [vmem:[%s225 + $0x1b8] sm:$0xff]
        %v283 = vld [vmem:[%s225 + $0x1c0] sm:$0xff]
        %v284 = vld [vmem:[%s225 + $0x1c8] sm:$0xff]
        %v285 = vld [vmem:[%s225 + $0x1d0] sm:$0xff]
        %v286 = vld [vmem:[%s225 + $0x1d8] sm:$0xff]
        %v287 = vld [vmem:[%s225 + $0x1e0] sm:$0xff]
        %v288 = vld [vmem:[%s225 + $0x1e8] sm:$0xff]
        %v289 = vld [vmem:[%s225 + $0x1f0] sm:$0xff]
        %v290 = vld [vmem:[%s225 + $0x1f8] sm:$0xff]
        %v291 = vld [vmem:[%s225 + $0x200] sm:$0xff]
        %v292 = vld [vmem:[%s225 + $0x208] sm:$0xff]
        %v293 = vld [vmem:[%s225 + $0x210] sm:$0xff]
        %v294 = vld [vmem:[%s225 + $0x218] sm:$0xff]
        %v295 = vld [vmem:[%s225 + $0x220] sm:$0xff]
        %v296 = vld [vmem:[%s225 + $0x228] sm:$0xff]
        %v297 = vld [vmem:[%s225 + $0x230] sm:$0xff]
        %v298 = vld [vmem:[%s225 + $0x238] sm:$0xff]
        %v299 = vld [vmem:[%s225 + $0x240] sm:$0xff]
        %v300 = vld [vmem:[%s225 + $0x248] sm:$0xff]
        %v301 = vld [vmem:[%s225 + $0x250] sm:$0xff]
        %v302 = vld [vmem:[%s225 + $0x258] sm:$0xff]
        %v303 = vld [vmem:[%s225 + $0x260] sm:$0xff]
        %v304 = vld [vmem:[%s225 + $0x268] sm:$0xff]
        %v305 = vld [vmem:[%s225 + $0x270] sm:$0xff]
        %v306 = vld [vmem:[%s225 + $0x278] sm:$0xff]
        %v307 = vld [vmem:[%s225 + $0x280] sm:$0xff]
        %v308 = vld [vmem:[%s225 + $0x288] sm:$0xff]
        %v309 = vld [vmem:[%s225 + $0x290] sm:$0xff]
        %v310 = vld [vmem:[%s225 + $0x298] sm:$0xff]
        %v311 = vld [vmem:[%s225 + $0x2a0] sm:$0xff]
        %v312 = vld [vmem:[%s225 + $0x2a8] sm:$0xff]
        %v313 = vld [vmem:[%s225 + $0x2b0] sm:$0xff]
        %v314 = vld [vmem:[%s225 + $0x2b8] sm:$0xff]
        %v315 = vld [vmem:[%s225 + $0x2c0] sm:$0xff]
        %v316 = vld [vmem:[%s225 + $0x2c8] sm:$0xff]
        %v317 = vld [vmem:[%s225 + $0x2d0] sm:$0xff]
        %v318 = vld [vmem:[%s225 + $0x2d8] sm:$0xff]
        %v319 = vld [vmem:[%s225 + $0x2e0] sm:$0xff]
        %v320 = vld [vmem:[%s225 + $0x2e8] sm:$0xff]
        %v321 = vld [vmem:[%s225 + $0x2f0] sm:$0xff]
        %v322 = vld [vmem:[%s225 + $0x2f8] sm:$0xff]
        %v323 = vld [vmem:[%s225 + $0x300] sm:$0xff]
        %v324 = vld [vmem:[%s225 + $0x308] sm:$0xff]
        %v325 = vld [vmem:[%s225 + $0x310] sm:$0xff]
        %v326 = vld [vmem:[%s225 + $0x318] sm:$0xff]
        %v327 = vld [vmem:[%s225 + $0x320] sm:$0xff]
        %v328 = vld [vmem:[%s225 + $0x328] sm:$0xff]
        %v329 = vld [vmem:[%s225 + $0x330] sm:$0xff]
        %v330 = vld [vmem:[%s225 + $0x338] sm:$0xff]
        %v331 = vld [vmem:[%s225 + $0x340] sm:$0xff]
        %v332 = vld [vmem:[%s225 + $0x348] sm:$0xff]
        %v333 = vld [vmem:[%s225 + $0x350] sm:$0xff]
        %v334 = vld [vmem:[%s225 + $0x358] sm:$0xff]
        %v335 = vld [vmem:[%s225 + $0x360] sm:$0xff]
        %v336 = vld [vmem:[%s225 + $0x368] sm:$0xff]
        %v337 = vld [vmem:[%s225 + $0x370] sm:$0xff]
        %v338 = vld [vmem:[%s225 + $0x378] sm:$0xff]
        %v339 = vld [vmem:[%s225 + $0x380] sm:$0xff]
        %v340 = vld [vmem:[%s225 + $0x388] sm:$0xff]
        %v341 = vld [vmem:[%s225 + $0x390] sm:$0xff]
        %v342 = vld [vmem:[%s225 + $0x398] sm:$0xff]
        %v343 = vld [vmem:[%s225 + $0x3a0] sm:$0xff]
        %v344 = vld [vmem:[%s225 + $0x3a8] sm:$0xff]
        %v345 = vld [vmem:[%s225 + $0x3b0] sm:$0xff]
        %v346 = vld [vmem:[%s225 + $0x3b8] sm:$0xff]
        %v347 = vld [vmem:[%s225 + $0x3c0] sm:$0xff]
        %v348 = vld [vmem:[%s225 + $0x3c8] sm:$0xff]
        %v349 = vld [vmem:[%s225 + $0x3d0] sm:$0xff]
        %v350 = vld [vmem:[%s225 + $0x3d8] sm:$0xff]
        %v351 = vld [vmem:[%s225 + $0x3e0] sm:$0xff]
        %v352 = vld [vmem:[%s225 + $0x3e8] sm:$0xff]
        %v353 = vld [vmem:[%s225 + $0x3f0] sm:$0xff]
        %v354 = vld [vmem:[%s225 + $0x3f8] sm:$0xff]
        %v355 = vld [vmem:[%s1] sm:$0xff]
        %v356 = vld [vmem:[%s1 + $0x8] sm:$0xff]
        %v357 = vld [vmem:[%s1 + $0x10] sm:$0xff]
        %v358 = vld [vmem:[%s1 + $0x18] sm:$0xff]
        %v359 = vld [vmem:[%s2] sm:$0x1]
        %v361 = vlaneseq
        %v362 = vshrl.u32 %v361, 7
        %v363 = vsub.s32 0, %v362
        %v364 = vrot.slane %v359, %v363
        %vm366 = vcmask 261120
        %v368 = vsel %vm366, %v227, 0
        %v371 = vsel %vm366, %v228, 0
        %v374 = vsel %vm366, %v229, 0
        %v377 = vsel %vm366, %v230, 0
        %v380 = vsel %vm366, %v231, 0
        %v383 = vsel %vm366, %v232, 0
        %v386 = vsel %vm366, %v233, 0
        %v389 = vsel %vm366, %v234, 0
        %v392 = vsel %vm366, %v235, 0
        %v395 = vsel %vm366, %v236, 0
        %v398 = vsel %vm366, %v237, 0
        %v401 = vsel %vm366, %v238, 0
        %v404 = vsel %vm366, %v239, 0
        %v407 = vsel %vm366, %v240, 0
        %v410 = vsel %vm366, %v241, 0
        %v413 = vsel %vm366, %v242, 0
        %v416 = vsel %vm366, %v243, 0
        %v419 = vsel %vm366, %v244, 0
        %v422 = vsel %vm366, %v245, 0
        %v425 = vsel %vm366, %v246, 0
        %v428 = vsel %vm366, %v247, 0
        %v431 = vsel %vm366, %v248, 0
        %v434 = vsel %vm366, %v249, 0
        %v437 = vsel %vm366, %v250, 0
        %v440 = vsel %vm366, %v251, 0
        %v443 = vsel %vm366, %v252, 0
        %v446 = vsel %vm366, %v253, 0
        %v449 = vsel %vm366, %v254, 0
        %v452 = vsel %vm366, %v255, 0
        %v455 = vsel %vm366, %v256, 0
        %v458 = vsel %vm366, %v257, 0
        %v461 = vsel %vm366, %v258, 0
        %v464 = vsel %vm366, %v259, 0
        %v467 = vsel %vm366, %v260, 0
        %v470 = vsel %vm366, %v261, 0
        %v473 = vsel %vm366, %v262, 0
        %v476 = vsel %vm366, %v263, 0
        %v479 = vsel %vm366, %v264, 0
        %v482 = vsel %vm366, %v265, 0
        %v485 = vsel %vm366, %v266, 0
        %v488 = vsel %vm366, %v267, 0
        %v491 = vsel %vm366, %v268, 0
        %v494 = vsel %vm366, %v269, 0
        %v497 = vsel %vm366, %v270, 0
        %v500 = vsel %vm366, %v271, 0
        %v503 = vsel %vm366, %v272, 0
        %v506 = vsel %vm366, %v273, 0
        %v509 = vsel %vm366, %v274, 0
        %v512 = vsel %vm366, %v275, 0
        %v515 = vsel %vm366, %v276, 0
        %v518 = vsel %vm366, %v277, 0
        %v521 = vsel %vm366, %v278, 0
        %v524 = vsel %vm366, %v279, 0
        %v527 = vsel %vm366, %v280, 0
        %v530 = vsel %vm366, %v281, 0
        %v533 = vsel %vm366, %v282, 0
        %v536 = vsel %vm366, %v283, 0
        %v539 = vsel %vm366, %v284, 0
        %v542 = vsel %vm366, %v285, 0
        %v545 = vsel %vm366, %v286, 0
        %v548 = vsel %vm366, %v287, 0
        %v551 = vsel %vm366, %v288, 0
        %v554 = vsel %vm366, %v289, 0
        %v557 = vsel %vm366, %v290, 0
        %v560 = vsel %vm366, %v291, 0
        %v563 = vsel %vm366, %v292, 0
        %v566 = vsel %vm366, %v293, 0
        %v569 = vsel %vm366, %v294, 0
        %v572 = vsel %vm366, %v295, 0
        %v575 = vsel %vm366, %v296, 0
        %v578 = vsel %vm366, %v297, 0
        %v581 = vsel %vm366, %v298, 0
        %v584 = vsel %vm366, %v299, 0
        %v587 = vsel %vm366, %v300, 0
        %v590 = vsel %vm366, %v301, 0
        %v593 = vsel %vm366, %v302, 0
        %v596 = vsel %vm366, %v303, 0
        %v599 = vsel %vm366, %v304, 0
        %v602 = vsel %vm366, %v305, 0
        %v605 = vsel %vm366, %v306, 0
        %v608 = vsel %vm366, %v307, 0
        %v611 = vsel %vm366, %v308, 0
        %v614 = vsel %vm366, %v309, 0
        %v617 = vsel %vm366, %v310, 0
        %v620 = vsel %vm366, %v311, 0
        %v623 = vsel %vm366, %v312, 0
        %v626 = vsel %vm366, %v313, 0
        %v629 = vsel %vm366, %v314, 0
        %v632 = vsel %vm366, %v315, 0
        %v635 = vsel %vm366, %v316, 0
        %v638 = vsel %vm366, %v317, 0
        %v641 = vsel %vm366, %v318, 0
        %v644 = vsel %vm366, %v319, 0
        %v647 = vsel %vm366, %v320, 0
        %v650 = vsel %vm366, %v321, 0
        %v653 = vsel %vm366, %v322, 0
        %v656 = vsel %vm366, %v323, 0
        %v659 = vsel %vm366, %v324, 0
        %v662 = vsel %vm366, %v325, 0
        %v665 = vsel %vm366, %v326, 0
        %v668 = vsel %vm366, %v327, 0
        %v671 = vsel %vm366, %v328, 0
        %v674 = vsel %vm366, %v329, 0
        %v677 = vsel %vm366, %v330, 0
        %v680 = vsel %vm366, %v331, 0
        %v683 = vsel %vm366, %v332, 0
        %v686 = vsel %vm366, %v333, 0
        %v689 = vsel %vm366, %v334, 0
        %v692 = vsel %vm366, %v335, 0
        %v695 = vsel %vm366, %v336, 0
        %v698 = vsel %vm366, %v337, 0
        %v701 = vsel %vm366, %v338, 0
        %v704 = vsel %vm366, %v339, 0
        %v707 = vsel %vm366, %v340, 0
        %v710 = vsel %vm366, %v341, 0
        %v713 = vsel %vm366, %v342, 0
        %v716 = vsel %vm366, %v343, 0
        %v719 = vsel %vm366, %v344, 0
        %v722 = vsel %vm366, %v345, 0
        %v725 = vsel %vm366, %v346, 0
        %v728 = vsel %vm366, %v347, 0
        %v731 = vsel %vm366, %v348, 0
        %v734 = vsel %vm366, %v349, 0
        %v737 = vsel %vm366, %v350, 0
        %v740 = vsel %vm366, %v351, 0
        %v743 = vsel %vm366, %v352, 0
        %v746 = vsel %vm366, %v353, 0
        %v749 = vsel %vm366, %v354, 0
        %751 = vmatprep.subr.mxu0 0.0
        %752 = vmatpush1.msra.mxu0 %v355
        %753 = vmatprep.subr.mxu0 0.0
        %754 = vmatpush1.msra.mxu0 %v356
        %755 = vmatprep.subr.mxu0 0.0
        %756 = vmatpush1.msra.mxu0 %v357
        %757 = vmatprep.subr.mxu0 0.0
        %758 = vmatpush1.msra.mxu0 %v358
        %759 = vmatprep.subr.mxu0 0.0
        %760 = vmatpush1.msra.mxu0 0.0
        %761 = vmatprep.subr.mxu0 0.0
        %762 = vmatpush1.msra.mxu0 0.0
        %763 = vmatprep.subr.mxu0 0.0
        %764 = vmatpush1.msra.mxu0 0.0
        %765 = vmatprep.subr.mxu0 0.0
        %766 = vmatpush1.msra.mxu0 0.0
        %767 = vmatprep.subr.mxu0 0.0
        %768 = vmatpush1.msra.mxu0 0.0
        %769 = vmatprep.subr.mxu0 0.0
        %770 = vmatpush1.msra.mxu0 0.0
        %771 = vmatprep.subr.mxu0 0.0
        %772 = vmatpush1.msra.mxu0 0.0
        %773 = vmatprep.subr.mxu0 0.0
        %774 = vmatpush1.msra.mxu0 0.0
        %775 = vmatprep.subr.mxu0 0.0
        %776 = vmatpush1.msra.mxu0 0.0
        %777 = vmatprep.subr.mxu0 0.0
        %778 = vmatpush1.msra.mxu0 0.0
        %779 = vmatprep.subr.mxu0 0.0
        %780 = vmatpush1.msra.mxu0 0.0
        %781 = vmatprep.subr.mxu0 0.0
        %782 = vmatpush1.msra.mxu0 0.0
        %783 = vmatprep.subr.mxu0 0.0
        %784 = vmatpush1.msra.mxu0 0.0
        %785 = vmatprep.subr.mxu0 0.0
        %786 = vmatpush1.msra.mxu0 0.0
        %787 = vmatprep.subr.mxu0 0.0
        %788 = vmatpush1.msra.mxu0 0.0
        %789 = vmatprep.subr.mxu0 0.0
        %790 = vmatpush1.msra.mxu0 0.0
        %791 = vmatprep.subr.mxu0 0.0
        %792 = vmatpush1.msra.mxu0 0.0
        %793 = vmatprep.subr.mxu0 0.0
        %794 = vmatpush1.msra.mxu0 0.0
        %795 = vmatprep.subr.mxu0 0.0
        %796 = vmatpush1.msra.mxu0 0.0
        %797 = vmatprep.subr.mxu0 0.0
        %798 = vmatpush1.msra.mxu0 0.0
        %799 = vmatprep.subr.mxu0 0.0
        %800 = vmatpush1.msra.mxu0 0.0
        %801 = vmatprep.subr.mxu0 0.0
        %802 = vmatpush1.msra.mxu0 0.0
        %803 = vmatprep.subr.mxu0 0.0
        %804 = vmatpush1.msra.mxu0 0.0
        %805 = vmatprep.subr.mxu0 0.0
        %806 = vmatpush1.msra.mxu0 0.0
        %807 = vmatprep.subr.mxu0 0.0
        %808 = vmatpush1.msra.mxu0 0.0
        %809 = vmatprep.subr.mxu0 0.0
        %810 = vmatpush1.msra.mxu0 0.0
        %811 = vmatprep.subr.mxu0 0.0
        %812 = vmatpush1.msra.mxu0 0.0
        %813 = vmatprep.subr.mxu0 0.0
        %814 = vmatpush1.msra.mxu0 0.0
        %815 = vmatprep.mubr.f32.mxu0 0.0
        %816 = vmatmul.mubr.f32.gmra.mrb[0].mxu0 %v368
        %v817 = vpop.f32.mrb[0].mxu0
        %v818 = vadd.f32 %v364, %v817
        %v819 = vpop.f32.mrb[0].mxu0
        %820 = vmatprep.mubr.f32.mxu0 0.0
        %821 = vmatmul.mubr.f32.gmra.mrb[0].mxu0 %v371
        %v822 = vpop.f32.mrb[0].mxu0
        %v823 = vadd.f32 %v364, %v822
        %v824 = vpop.f32.mrb[0].mxu0
        %825 = vmatprep.mubr.f32.mxu0 0.0
        %826 = vmatmul.mubr.f32.gmra.mrb[0].mxu0 %v374
        %v827 = vpop.f32.mrb[0].mxu0
        %v828 = vadd.f32 %v364, %v827
        %v829 = vpop.f32.mrb[0].mxu0
        %830 = vmatprep.mubr.f32.mxu0 0.0
        %831 = vmatmul.mubr.f32.gmra.mrb[0].mxu0 %v377
        %v832 = vpop.f32.mrb[0].mxu0
        %v833 = vadd.f32 %v364, %v832
        %v834 = vpop.f32.mrb[0].mxu0
        %835 = vmatprep.mubr.f32.mxu0 0.0
        %836 = vmatmul.mubr.f32.gmra.mrb[0].mxu0 %v380
        %v837 = vpop.f32.mrb[0].mxu0
        %v838 = vadd.f32 %v364, %v837
        %v839 = vpop.f32.mrb[0].mxu0
        %840 = vmatprep.mubr.f32.mxu0 0.0
        %841 = vmatmul.mubr.f32.gmra.mrb[0].mxu0 %v383
        %v842 = vpop.f32.mrb[0].mxu0
        %v843 = vadd.f32 %v364, %v842
        %v844 = vpop.f32.mrb[0].mxu0
        %845 = vmatprep.mubr.f32.mxu0 0.0
        %846 = vmatmul.mubr.f32.gmra.mrb[0].mxu0 %v386
        %v847 = vpop.f32.mrb[0].mxu0
        %v848 = vadd.f32 %v364, %v847
        %v849 = vpop.f32.mrb[0].mxu0
        %850 = vmatprep.mubr.f32.mxu0 0.0
        %851 = vmatmul.mubr.f32.gmra.mrb[0].mxu0 %v389
        %v852 = vpop.f32.mrb[0].mxu0
        %v853 = vadd.f32 %v364, %v852
        %v854 = vpop.f32.mrb[0].mxu0
        %855 = vmatprep.mubr.f32.mxu0 0.0
        %856 = vmatmul.mubr.f32.gmra.mrb[0].mxu0 %v392
        %v857 = vpop.f32.mrb[0].mxu0
        %v858 = vadd.f32 %v364, %v857
        %v859 = vpop.f32.mrb[0].mxu0
        %860 = vmatprep.mubr.f32.mxu0 0.0
        %861 = vmatmul.mubr.f32.gmra.mrb[0].mxu0 %v395
        %v862 = vpop.f32.mrb[0].mxu0
        %v863 = vadd.f32 %v364, %v862
        %v864 = vpop.f32.mrb[0].mxu0
        %865 = vmatprep.mubr.f32.mxu0 0.0
        %866 = vmatmul.mubr.f32.gmra.mrb[0].mxu0 %v398
        %v867 = vpop.f32.mrb[0].mxu0
        %v868 = vadd.f32 %v364, %v867
        %v869 = vpop.f32.mrb[0].mxu0
        %870 = vmatprep.mubr.f32.mxu0 0.0
        %871 = vmatmul.mubr.f32.gmra.mrb[0].mxu0 %v401
        %v872 = vpop.f32.mrb[0].mxu0
        %v873 = vadd.f32 %v364, %v872
        %v874 = vpop.f32.mrb[0].mxu0
        %875 = vmatprep.mubr.f32.mxu0 0.0
        %876 = vmatmul.mubr.f32.gmra.mrb[0].mxu0 %v404
        %v877 = vpop.f32.mrb[0].mxu0
        %v878 = vadd.f32 %v364, %v877
        %v879 = vpop.f32.mrb[0].mxu0
        %880 = vmatprep.mubr.f32.mxu0 0.0
        %881 = vmatmul.mubr.f32.gmra.mrb[0].mxu0 %v407
        %v882 = vpop.f32.mrb[0].mxu0
        %v883 = vadd.f32 %v364, %v882
        %v884 = vpop.f32.mrb[0].mxu0
        %885 = vmatprep.mubr.f32.mxu0 0.0
        %886 = vmatmul.mubr.f32.gmra.mrb[0].mxu0 %v410
        %v887 = vpop.f32.mrb[0].mxu0
        %v888 = vadd.f32 %v364, %v887
        %v889 = vpop.f32.mrb[0].mxu0
        %890 = vmatprep.mubr.f32.mxu0 0.0
        %891 = vmatmul.mubr.f32.gmra.mrb[0].mxu0 %v413
        %v892 = vpop.f32.mrb[0].mxu0
        %v893 = vadd.f32 %v364, %v892
        %v894 = vpop.f32.mrb[0].mxu0
        %895 = vmatprep.mubr.f32.mxu0 0.0
        %896 = vmatmul.mubr.f32.gmra.mrb[0].mxu0 %v416
        %v897 = vpop.f32.mrb[0].mxu0
        %v898 = vadd.f32 %v364, %v897
        %v899 = vpop.f32.mrb[0].mxu0
        %900 = vmatprep.mubr.f32.mxu0 0.0
        %901 = vmatmul.mubr.f32.gmra.mrb[0].mxu0 %v419
        %v902 = vpop.f32.mrb[0].mxu0
        %v903 = vadd.f32 %v364, %v902
        %v904 = vpop.f32.mrb[0].mxu0
        %905 = vmatprep.mubr.f32.mxu0 0.0
        %906 = vmatmul.mubr.f32.gmra.mrb[0].mxu0 %v422
        %v907 = vpop.f32.mrb[0].mxu0
        %v908 = vadd.f32 %v364, %v907
        %v909 = vpop.f32.mrb[0].mxu0
        %910 = vmatprep.mubr.f32.mxu0 0.0
        %911 = vmatmul.mubr.f32.gmra.mrb[0].mxu0 %v425
        %v912 = vpop.f32.mrb[0].mxu0
        %v913 = vadd.f32 %v364, %v912
        %v914 = vpop.f32.mrb[0].mxu0
        %915 = vmatprep.mubr.f32.mxu0 0.0
        %916 = vmatmul.mubr.f32.gmra.mrb[0].mxu0 %v428
        %v917 = vpop.f32.mrb[0].mxu0
        %v918 = vadd.f32 %v364, %v917
        %v919 = vpop.f32.mrb[0].mxu0
        %920 = vmatprep.mubr.f32.mxu0 0.0
        %921 = vmatmul.mubr.f32.gmra.mrb[0].mxu0 %v431
        %v922 = vpop.f32.mrb[0].mxu0
        %v923 = vadd.f32 %v364, %v922
        %v924 = vpop.f32.mrb[0].mxu0
        %925 = vmatprep.mubr.f32.mxu0 0.0
        %926 = vmatmul.mubr.f32.gmra.mrb[0].mxu0 %v434
        %v927 = vpop.f32.mrb[0].mxu0
        %v928 = vadd.f32 %v364, %v927
        %v929 = vpop.f32.mrb[0].mxu0
        %930 = vmatprep.mubr.f32.mxu0 0.0
        %931 = vmatmul.mubr.f32.gmra.mrb[0].mxu0 %v437
        %v932 = vpop.f32.mrb[0].mxu0
        %v933 = vadd.f32 %v364, %v932
        %v934 = vpop.f32.mrb[0].mxu0
        %935 = vmatprep.mubr.f32.mxu0 0.0
        %936 = vmatmul.mubr.f32.gmra.mrb[0].mxu0 %v440
        %v937 = vpop.f32.mrb[0].mxu0
        %v938 = vadd.f32 %v364, %v937
        %v939 = vpop.f32.mrb[0].mxu0
        %940 = vmatprep.mubr.f32.mxu0 0.0
        %941 = vmatmul.mubr.f32.gmra.mrb[0].mxu0 %v443
        %v942 = vpop.f32.mrb[0].mxu0
        %v943 = vadd.f32 %v364, %v942
        %v944 = vpop.f32.mrb[0].mxu0
        %945 = vmatprep.mubr.f32.mxu0 0.0
        %946 = vmatmul.mubr.f32.gmra.mrb[0].mxu0 %v446
        %v947 = vpop.f32.mrb[0].mxu0
        %v948 = vadd.f32 %v364, %v947
        %v949 = vpop.f32.mrb[0].mxu0
        %950 = vmatprep.mubr.f32.mxu0 0.0
        %951 = vmatmul.mubr.f32.gmra.mrb[0].mxu0 %v449
        %v952 = vpop.f32.mrb[0].mxu0
        %v953 = vadd.f32 %v364, %v952
        %v954 = vpop.f32.mrb[0].mxu0
        %955 = vmatprep.mubr.f32.mxu0 0.0
        %956 = vmatmul.mubr.f32.gmra.mrb[0].mxu0 %v452
        %v957 = vpop.f32.mrb[0].mxu0
        %v958 = vadd.f32 %v364, %v957
        %v959 = vpop.f32.mrb[0].mxu0
        %960 = vmatprep.mubr.f32.mxu0 0.0
        %961 = vmatmul.mubr.f32.gmra.mrb[0].mxu0 %v455
        %v962 = vpop.f32.mrb[0].mxu0
        %v963 = vadd.f32 %v364, %v962
        %v964 = vpop.f32.mrb[0].mxu0
        %965 = vmatprep.mubr.f32.mxu0 0.0
        %966 = vmatmul.mubr.f32.gmra.mrb[0].mxu0 %v458
        %v967 = vpop.f32.mrb[0].mxu0
        %v968 = vadd.f32 %v364, %v967
        %v969 = vpop.f32.mrb[0].mxu0
        %970 = vmatprep.mubr.f32.mxu0 0.0
        %971 = vmatmul.mubr.f32.gmra.mrb[0].mxu0 %v461
        %v972 = vpop.f32.mrb[0].mxu0
        %v973 = vadd.f32 %v364, %v972
        %v974 = vpop.f32.mrb[0].mxu0
        %975 = vmatprep.mubr.f32.mxu0 0.0
        %976 = vmatmul.mubr.f32.gmra.mrb[0].mxu0 %v464
        %v977 = vpop.f32.mrb[0].mxu0
        %v978 = vadd.f32 %v364, %v977
        %v979 = vpop.f32.mrb[0].mxu0
        %980 = vmatprep.mubr.f32.mxu0 0.0
        %981 = vmatmul.mubr.f32.gmra.mrb[0].mxu0 %v467
        %v982 = vpop.f32.mrb[0].mxu0
        %v983 = vadd.f32 %v364, %v982
        %v984 = vpop.f32.mrb[0].mxu0
        %985 = vmatprep.mubr.f32.mxu0 0.0
        %986 = vmatmul.mubr.f32.gmra.mrb[0].mxu0 %v470
        %v987 = vpop.f32.mrb[0].mxu0
        %v988 = vadd.f32 %v364, %v987
        %v989 = vpop.f32.mrb[0].mxu0
        %990 = vmatprep.mubr.f32.mxu0 0.0
        %991 = vmatmul.mubr.f32.gmra.mrb[0].mxu0 %v473
        %v992 = vpop.f32.mrb[0].mxu0
        %v993 = vadd.f32 %v364, %v992
        %v994 = vpop.f32.mrb[0].mxu0
        %995 = vmatprep.mubr.f32.mxu0 0.0
        %996 = vmatmul.mubr.f32.gmra.mrb[0].mxu0 %v476
        %v997 = vpop.f32.mrb[0].mxu0
        %v998 = vadd.f32 %v364, %v997
        %v999 = vpop.f32.mrb[0].mxu0
        %1000 = vmatprep.mubr.f32.mxu0 0.0
        %1001 = vmatmul.mubr.f32.gmra.mrb[0].mxu0 %v479
        %v1002 = vpop.f32.mrb[0].mxu0
        %v1003 = vadd.f32 %v364, %v1002
        %v1004 = vpop.f32.mrb[0].mxu0
        %1005 = vmatprep.mubr.f32.mxu0 0.0
        %1006 = vmatmul.mubr.f32.gmra.mrb[0].mxu0 %v482
        %v1007 = vpop.f32.mrb[0].mxu0
        %v1008 = vadd.f32 %v364, %v1007
        %v1009 = vpop.f32.mrb[0].mxu0
        %1010 = vmatprep.mubr.f32.mxu0 0.0
        %1011 = vmatmul.mubr.f32.gmra.mrb[0].mxu0 %v485
        %v1012 = vpop.f32.mrb[0].mxu0
        %v1013 = vadd.f32 %v364, %v1012
        %v1014 = vpop.f32.mrb[0].mxu0
        %1015 = vmatprep.mubr.f32.mxu0 0.0
        %1016 = vmatmul.mubr.f32.gmra.mrb[0].mxu0 %v488
        %v1017 = vpop.f32.mrb[0].mxu0
        %v1018 = vadd.f32 %v364, %v1017
        %v1019 = vpop.f32.mrb[0].mxu0
        %1020 = vmatprep.mubr.f32.mxu0 0.0
        %1021 = vmatmul.mubr.f32.gmra.mrb[0].mxu0 %v491
        %v1022 = vpop.f32.mrb[0].mxu0
        %v1023 = vadd.f32 %v364, %v1022
        %v1024 = vpop.f32.mrb[0].mxu0
        %1025 = vmatprep.mubr.f32.mxu0 0.0
        %1026 = vmatmul.mubr.f32.gmra.mrb[0].mxu0 %v494
        %v1027 = vpop.f32.mrb[0].mxu0
        %v1028 = vadd.f32 %v364, %v1027
        %v1029 = vpop.f32.mrb[0].mxu0
        %1030 = vmatprep.mubr.f32.mxu0 0.0
        %1031 = vmatmul.mubr.f32.gmra.mrb[0].mxu0 %v497
        %v1032 = vpop.f32.mrb[0].mxu0
        %v1033 = vadd.f32 %v364, %v1032
        %v1034 = vpop.f32.mrb[0].mxu0
        %1035 = vmatprep.mubr.f32.mxu0 0.0
        %1036 = vmatmul.mubr.f32.gmra.mrb[0].mxu0 %v500
        %v1037 = vpop.f32.mrb[0].mxu0
        %v1038 = vadd.f32 %v364, %v1037
        %v1039 = vpop.f32.mrb[0].mxu0
        %1040 = vmatprep.mubr.f32.mxu0 0.0
        %1041 = vmatmul.mubr.f32.gmra.mrb[0].mxu0 %v503
        %v1042 = vpop.f32.mrb[0].mxu0
        %v1043 = vadd.f32 %v364, %v1042
        %v1044 = vpop.f32.mrb[0].mxu0
        %1045 = vmatprep.mubr.f32.mxu0 0.0
        %1046 = vmatmul.mubr.f32.gmra.mrb[0].mxu0 %v506
        %v1047 = vpop.f32.mrb[0].mxu0
        %v1048 = vadd.f32 %v364, %v1047
        %v1049 = vpop.f32.mrb[0].mxu0
        %1050 = vmatprep.mubr.f32.mxu0 0.0
        %1051 = vmatmul.mubr.f32.gmra.mrb[0].mxu0 %v509
        %v1052 = vpop.f32.mrb[0].mxu0
        %v1053 = vadd.f32 %v364, %v1052
        %v1054 = vpop.f32.mrb[0].mxu0
        %1055 = vmatprep.mubr.f32.mxu0 0.0
        %1056 = vmatmul.mubr.f32.gmra.mrb[0].mxu0 %v512
        %v1057 = vpop.f32.mrb[0].mxu0
        %v1058 = vadd.f32 %v364, %v1057
        %v1059 = vpop.f32.mrb[0].mxu0
        %1060 = vmatprep.mubr.f32.mxu0 0.0
        %1061 = vmatmul.mubr.f32.gmra.mrb[0].mxu0 %v515
        %v1062 = vpop.f32.mrb[0].mxu0
        %v1063 = vadd.f32 %v364, %v1062
        %v1064 = vpop.f32.mrb[0].mxu0
        %1065 = vmatprep.mubr.f32.mxu0 0.0
        %1066 = vmatmul.mubr.f32.gmra.mrb[0].mxu0 %v518
        %v1067 = vpop.f32.mrb[0].mxu0
        %v1068 = vadd.f32 %v364, %v1067
        %v1069 = vpop.f32.mrb[0].mxu0
        %1070 = vmatprep.mubr.f32.mxu0 0.0
        %1071 = vmatmul.mubr.f32.gmra.mrb[0].mxu0 %v521
        %v1072 = vpop.f32.mrb[0].mxu0
        %v1073 = vadd.f32 %v364, %v1072
        %v1074 = vpop.f32.mrb[0].mxu0
        %1075 = vmatprep.mubr.f32.mxu0 0.0
        %1076 = vmatmul.mubr.f32.gmra.mrb[0].mxu0 %v524
        %v1077 = vpop.f32.mrb[0].mxu0
        %v1078 = vadd.f32 %v364, %v1077
        %v1079 = vpop.f32.mrb[0].mxu0
        %1080 = vmatprep.mubr.f32.mxu0 0.0
        %1081 = vmatmul.mubr.f32.gmra.mrb[0].mxu0 %v527
        %v1082 = vpop.f32.mrb[0].mxu0
        %v1083 = vadd.f32 %v364, %v1082
        %v1084 = vpop.f32.mrb[0].mxu0
        %1085 = vmatprep.mubr.f32.mxu0 0.0
        %1086 = vmatmul.mubr.f32.gmra.mrb[0].mxu0 %v530
        %v1087 = vpop.f32.mrb[0].mxu0
        %v1088 = vadd.f32 %v364, %v1087
        %v1089 = vpop.f32.mrb[0].mxu0
        %1090 = vmatprep.mubr.f32.mxu0 0.0
        %1091 = vmatmul.mubr.f32.gmra.mrb[0].mxu0 %v533
        %v1092 = vpop.f32.mrb[0].mxu0
        %v1093 = vadd.f32 %v364, %v1092
        %v1094 = vpop.f32.mrb[0].mxu0
        %1095 = vmatprep.mubr.f32.mxu0 0.0
        %1096 = vmatmul.mubr.f32.gmra.mrb[0].mxu0 %v536
        %v1097 = vpop.f32.mrb[0].mxu0
        %v1098 = vadd.f32 %v364, %v1097
        %v1099 = vpop.f32.mrb[0].mxu0
        %1100 = vmatprep.mubr.f32.mxu0 0.0
        %1101 = vmatmul.mubr.f32.gmra.mrb[0].mxu0 %v539
        %v1102 = vpop.f32.mrb[0].mxu0
        %v1103 = vadd.f32 %v364, %v1102
        %v1104 = vpop.f32.mrb[0].mxu0
        %1105 = vmatprep.mubr.f32.mxu0 0.0
        %1106 = vmatmul.mubr.f32.gmra.mrb[0].mxu0 %v542
        %v1107 = vpop.f32.mrb[0].mxu0
        %v1108 = vadd.f32 %v364, %v1107
        %v1109 = vpop.f32.mrb[0].mxu0
        %1110 = vmatprep.mubr.f32.mxu0 0.0
        %1111 = vmatmul.mubr.f32.gmra.mrb[0].mxu0 %v545
        %v1112 = vpop.f32.mrb[0].mxu0
        %v1113 = vadd.f32 %v364, %v1112
        %v1114 = vpop.f32.mrb[0].mxu0
        %1115 = vmatprep.mubr.f32.mxu0 0.0
        %1116 = vmatmul.mubr.f32.gmra.mrb[0].mxu0 %v548
        %v1117 = vpop.f32.mrb[0].mxu0
        %v1118 = vadd.f32 %v364, %v1117
        %v1119 = vpop.f32.mrb[0].mxu0
        %1120 = vmatprep.mubr.f32.mxu0 0.0
        %1121 = vmatmul.mubr.f32.gmra.mrb[0].mxu0 %v551
        %v1122 = vpop.f32.mrb[0].mxu0
        %v1123 = vadd.f32 %v364, %v1122
        %v1124 = vpop.f32.mrb[0].mxu0
        %1125 = vmatprep.mubr.f32.mxu0 0.0
        %1126 = vmatmul.mubr.f32.gmra.mrb[0].mxu0 %v554
        %v1127 = vpop.f32.mrb[0].mxu0
        %v1128 = vadd.f32 %v364, %v1127
        %v1129 = vpop.f32.mrb[0].mxu0
        %1130 = vmatprep.mubr.f32.mxu0 0.0
        %1131 = vmatmul.mubr.f32.gmra.mrb[0].mxu0 %v557
        %v1132 = vpop.f32.mrb[0].mxu0
        %v1133 = vadd.f32 %v364, %v1132
        %v1134 = vpop.f32.mrb[0].mxu0
        %1135 = vmatprep.mubr.f32.mxu0 0.0
        %1136 = vmatmul.mubr.f32.gmra.mrb[0].mxu0 %v560
        %v1137 = vpop.f32.mrb[0].mxu0
        %v1138 = vadd.f32 %v364, %v1137
        %v1139 = vpop.f32.mrb[0].mxu0
        %1140 = vmatprep.mubr.f32.mxu0 0.0
        %1141 = vmatmul.mubr.f32.gmra.mrb[0].mxu0 %v563
        %v1142 = vpop.f32.mrb[0].mxu0
        %v1143 = vadd.f32 %v364, %v1142
        %v1144 = vpop.f32.mrb[0].mxu0
        %1145 = vmatprep.mubr.f32.mxu0 0.0
        %1146 = vmatmul.mubr.f32.gmra.mrb[0].mxu0 %v566
        %v1147 = vpop.f32.mrb[0].mxu0
        %v1148 = vadd.f32 %v364, %v1147
        %v1149 = vpop.f32.mrb[0].mxu0
        %1150 = vmatprep.mubr.f32.mxu0 0.0
        %1151 = vmatmul.mubr.f32.gmra.mrb[0].mxu0 %v569
        %v1152 = vpop.f32.mrb[0].mxu0
        %v1153 = vadd.f32 %v364, %v1152
        %v1154 = vpop.f32.mrb[0].mxu0
        %1155 = vmatprep.mubr.f32.mxu0 0.0
        %1156 = vmatmul.mubr.f32.gmra.mrb[0].mxu0 %v572
        %v1157 = vpop.f32.mrb[0].mxu0
        %v1158 = vadd.f32 %v364, %v1157
        %v1159 = vpop.f32.mrb[0].mxu0
        %1160 = vmatprep.mubr.f32.mxu0 0.0
        %1161 = vmatmul.mubr.f32.gmra.mrb[0].mxu0 %v575
        %v1162 = vpop.f32.mrb[0].mxu0
        %v1163 = vadd.f32 %v364, %v1162
        %v1164 = vpop.f32.mrb[0].mxu0
        %1165 = vmatprep.mubr.f32.mxu0 0.0
        %1166 = vmatmul.mubr.f32.gmra.mrb[0].mxu0 %v578
        %v1167 = vpop.f32.mrb[0].mxu0
        %v1168 = vadd.f32 %v364, %v1167
        %v1169 = vpop.f32.mrb[0].mxu0
        %1170 = vmatprep.mubr.f32.mxu0 0.0
        %1171 = vmatmul.mubr.f32.gmra.mrb[0].mxu0 %v581
        %v1172 = vpop.f32.mrb[0].mxu0
        %v1173 = vadd.f32 %v364, %v1172
        %v1174 = vpop.f32.mrb[0].mxu0
        %1175 = vmatprep.mubr.f32.mxu0 0.0
        %1176 = vmatmul.mubr.f32.gmra.mrb[0].mxu0 %v584
        %v1177 = vpop.f32.mrb[0].mxu0
        %v1178 = vadd.f32 %v364, %v1177
        %v1179 = vpop.f32.mrb[0].mxu0
        %1180 = vmatprep.mubr.f32.mxu0 0.0
        %1181 = vmatmul.mubr.f32.gmra.mrb[0].mxu0 %v587
        %v1182 = vpop.f32.mrb[0].mxu0
        %v1183 = vadd.f32 %v364, %v1182
        %v1184 = vpop.f32.mrb[0].mxu0
        %1185 = vmatprep.mubr.f32.mxu0 0.0
        %1186 = vmatmul.mubr.f32.gmra.mrb[0].mxu0 %v590
        %v1187 = vpop.f32.mrb[0].mxu0
        %v1188 = vadd.f32 %v364, %v1187
        %v1189 = vpop.f32.mrb[0].mxu0
        %1190 = vmatprep.mubr.f32.mxu0 0.0
        %1191 = vmatmul.mubr.f32.gmra.mrb[0].mxu0 %v593
        %v1192 = vpop.f32.mrb[0].mxu0
        %v1193 = vadd.f32 %v364, %v1192
        %v1194 = vpop.f32.mrb[0].mxu0
        %1195 = vmatprep.mubr.f32.mxu0 0.0
        %1196 = vmatmul.mubr.f32.gmra.mrb[0].mxu0 %v596
        %v1197 = vpop.f32.mrb[0].mxu0
        %v1198 = vadd.f32 %v364, %v1197
        %v1199 = vpop.f32.mrb[0].mxu0
        %1200 = vmatprep.mubr.f32.mxu0 0.0
        %1201 = vmatmul.mubr.f32.gmra.mrb[0].mxu0 %v599
        %v1202 = vpop.f32.mrb[0].mxu0
        %v1203 = vadd.f32 %v364, %v1202
        %v1204 = vpop.f32.mrb[0].mxu0
        %1205 = vmatprep.mubr.f32.mxu0 0.0
        %1206 = vmatmul.mubr.f32.gmra.mrb[0].mxu0 %v602
        %v1207 = vpop.f32.mrb[0].mxu0
        %v1208 = vadd.f32 %v364, %v1207
        %v1209 = vpop.f32.mrb[0].mxu0
        %1210 = vmatprep.mubr.f32.mxu0 0.0
        %1211 = vmatmul.mubr.f32.gmra.mrb[0].mxu0 %v605
        %v1212 = vpop.f32.mrb[0].mxu0
        %v1213 = vadd.f32 %v364, %v1212
        %v1214 = vpop.f32.mrb[0].mxu0
        %1215 = vmatprep.mubr.f32.mxu0 0.0
        %1216 = vmatmul.mubr.f32.gmra.mrb[0].mxu0 %v608
        %v1217 = vpop.f32.mrb[0].mxu0
        %v1218 = vadd.f32 %v364, %v1217
        %v1219 = vpop.f32.mrb[0].mxu0
        %1220 = vmatprep.mubr.f32.mxu0 0.0
        %1221 = vmatmul.mubr.f32.gmra.mrb[0].mxu0 %v611
        %v1222 = vpop.f32.mrb[0].mxu0
        %v1223 = vadd.f32 %v364, %v1222
        %v1224 = vpop.f32.mrb[0].mxu0
        %1225 = vmatprep.mubr.f32.mxu0 0.0
        %1226 = vmatmul.mubr.f32.gmra.mrb[0].mxu0 %v614
        %v1227 = vpop.f32.mrb[0].mxu0
        %v1228 = vadd.f32 %v364, %v1227
        %v1229 = vpop.f32.mrb[0].mxu0
        %1230 = vmatprep.mubr.f32.mxu0 0.0
        %1231 = vmatmul.mubr.f32.gmra.mrb[0].mxu0 %v617
        %v1232 = vpop.f32.mrb[0].mxu0
        %v1233 = vadd.f32 %v364, %v1232
        %v1234 = vpop.f32.mrb[0].mxu0
        %1235 = vmatprep.mubr.f32.mxu0 0.0
        %1236 = vmatmul.mubr.f32.gmra.mrb[0].mxu0 %v620
        %v1237 = vpop.f32.mrb[0].mxu0
        %v1238 = vadd.f32 %v364, %v1237
        %v1239 = vpop.f32.mrb[0].mxu0
        %1240 = vmatprep.mubr.f32.mxu0 0.0
        %1241 = vmatmul.mubr.f32.gmra.mrb[0].mxu0 %v623
        %v1242 = vpop.f32.mrb[0].mxu0
        %v1243 = vadd.f32 %v364, %v1242
        %v1244 = vpop.f32.mrb[0].mxu0
        %1245 = vmatprep.mubr.f32.mxu0 0.0
        %1246 = vmatmul.mubr.f32.gmra.mrb[0].mxu0 %v626
        %v1247 = vpop.f32.mrb[0].mxu0
        %v1248 = vadd.f32 %v364, %v1247
        %v1249 = vpop.f32.mrb[0].mxu0
        %1250 = vmatprep.mubr.f32.mxu0 0.0
        %1251 = vmatmul.mubr.f32.gmra.mrb[0].mxu0 %v629
        %v1252 = vpop.f32.mrb[0].mxu0
        %v1253 = vadd.f32 %v364, %v1252
        %v1254 = vpop.f32.mrb[0].mxu0
        %1255 = vmatprep.mubr.f32.mxu0 0.0
        %1256 = vmatmul.mubr.f32.gmra.mrb[0].mxu0 %v632
        %v1257 = vpop.f32.mrb[0].mxu0
        %v1258 = vadd.f32 %v364, %v1257
        %v1259 = vpop.f32.mrb[0].mxu0
        %1260 = vmatprep.mubr.f32.mxu0 0.0
        %1261 = vmatmul.mubr.f32.gmra.mrb[0].mxu0 %v635
        %v1262 = vpop.f32.mrb[0].mxu0
        %v1263 = vadd.f32 %v364, %v1262
        %v1264 = vpop.f32.mrb[0].mxu0
        %1265 = vmatprep.mubr.f32.mxu0 0.0
        %1266 = vmatmul.mubr.f32.gmra.mrb[0].mxu0 %v638
        %v1267 = vpop.f32.mrb[0].mxu0
        %v1268 = vadd.f32 %v364, %v1267
        %v1269 = vpop.f32.mrb[0].mxu0
        %1270 = vmatprep.mubr.f32.mxu0 0.0
        %1271 = vmatmul.mubr.f32.gmra.mrb[0].mxu0 %v641
        %v1272 = vpop.f32.mrb[0].mxu0
        %v1273 = vadd.f32 %v364, %v1272
        %v1274 = vpop.f32.mrb[0].mxu0
        %1275 = vmatprep.mubr.f32.mxu0 0.0
        %1276 = vmatmul.mubr.f32.gmra.mrb[0].mxu0 %v644
        %v1277 = vpop.f32.mrb[0].mxu0
        %v1278 = vadd.f32 %v364, %v1277
        %v1279 = vpop.f32.mrb[0].mxu0
        %1280 = vmatprep.mubr.f32.mxu0 0.0
        %1281 = vmatmul.mubr.f32.gmra.mrb[0].mxu0 %v647
        %v1282 = vpop.f32.mrb[0].mxu0
        %v1283 = vadd.f32 %v364, %v1282
        %v1284 = vpop.f32.mrb[0].mxu0
        %1285 = vmatprep.mubr.f32.mxu0 0.0
        %1286 = vmatmul.mubr.f32.gmra.mrb[0].mxu0 %v650
        %v1287 = vpop.f32.mrb[0].mxu0
        %v1288 = vadd.f32 %v364, %v1287
        %v1289 = vpop.f32.mrb[0].mxu0
        %1290 = vmatprep.mubr.f32.mxu0 0.0
        %1291 = vmatmul.mubr.f32.gmra.mrb[0].mxu0 %v653
        %v1292 = vpop.f32.mrb[0].mxu0
        %v1293 = vadd.f32 %v364, %v1292
        %v1294 = vpop.f32.mrb[0].mxu0
        %1295 = vmatprep.mubr.f32.mxu0 0.0
        %1296 = vmatmul.mubr.f32.gmra.mrb[0].mxu0 %v656
        %v1297 = vpop.f32.mrb[0].mxu0
        %v1298 = vadd.f32 %v364, %v1297
        %v1299 = vpop.f32.mrb[0].mxu0
        %1300 = vmatprep.mubr.f32.mxu0 0.0
        %1301 = vmatmul.mubr.f32.gmra.mrb[0].mxu0 %v659
        %v1302 = vpop.f32.mrb[0].mxu0
        %v1303 = vadd.f32 %v364, %v1302
        %v1304 = vpop.f32.mrb[0].mxu0
        %1305 = vmatprep.mubr.f32.mxu0 0.0
        %1306 = vmatmul.mubr.f32.gmra.mrb[0].mxu0 %v662
        %v1307 = vpop.f32.mrb[0].mxu0
        %v1308 = vadd.f32 %v364, %v1307
        %v1309 = vpop.f32.mrb[0].mxu0
        %1310 = vmatprep.mubr.f32.mxu0 0.0
        %1311 = vmatmul.mubr.f32.gmra.mrb[0].mxu0 %v665
        %v1312 = vpop.f32.mrb[0].mxu0
        %v1313 = vadd.f32 %v364, %v1312
        %v1314 = vpop.f32.mrb[0].mxu0
        %1315 = vmatprep.mubr.f32.mxu0 0.0
        %1316 = vmatmul.mubr.f32.gmra.mrb[0].mxu0 %v668
        %v1317 = vpop.f32.mrb[0].mxu0
        %v1318 = vadd.f32 %v364, %v1317
        %v1319 = vpop.f32.mrb[0].mxu0
        %1320 = vmatprep.mubr.f32.mxu0 0.0
        %1321 = vmatmul.mubr.f32.gmra.mrb[0].mxu0 %v671
        %v1322 = vpop.f32.mrb[0].mxu0
        %v1323 = vadd.f32 %v364, %v1322
        %v1324 = vpop.f32.mrb[0].mxu0
        %1325 = vmatprep.mubr.f32.mxu0 0.0
        %1326 = vmatmul.mubr.f32.gmra.mrb[0].mxu0 %v674
        %v1327 = vpop.f32.mrb[0].mxu0
        %v1328 = vadd.f32 %v364, %v1327
        %v1329 = vpop.f32.mrb[0].mxu0
        %1330 = vmatprep.mubr.f32.mxu0 0.0
        %1331 = vmatmul.mubr.f32.gmra.mrb[0].mxu0 %v677
        %v1332 = vpop.f32.mrb[0].mxu0
        %v1333 = vadd.f32 %v364, %v1332
        %v1334 = vpop.f32.mrb[0].mxu0
        %1335 = vmatprep.mubr.f32.mxu0 0.0
        %1336 = vmatmul.mubr.f32.gmra.mrb[0].mxu0 %v680
        %v1337 = vpop.f32.mrb[0].mxu0
        %v1338 = vadd.f32 %v364, %v1337
        %v1339 = vpop.f32.mrb[0].mxu0
        %1340 = vmatprep.mubr.f32.mxu0 0.0
        %1341 = vmatmul.mubr.f32.gmra.mrb[0].mxu0 %v683
        %v1342 = vpop.f32.mrb[0].mxu0
        %v1343 = vadd.f32 %v364, %v1342
        %v1344 = vpop.f32.mrb[0].mxu0
        %1345 = vmatprep.mubr.f32.mxu0 0.0
        %1346 = vmatmul.mubr.f32.gmra.mrb[0].mxu0 %v686
        %v1347 = vpop.f32.mrb[0].mxu0
        %v1348 = vadd.f32 %v364, %v1347
        %v1349 = vpop.f32.mrb[0].mxu0
        %1350 = vmatprep.mubr.f32.mxu0 0.0
        %1351 = vmatmul.mubr.f32.gmra.mrb[0].mxu0 %v689
        %v1352 = vpop.f32.mrb[0].mxu0
        %v1353 = vadd.f32 %v364, %v1352
        %v1354 = vpop.f32.mrb[0].mxu0
        %1355 = vmatprep.mubr.f32.mxu0 0.0
        %1356 = vmatmul.mubr.f32.gmra.mrb[0].mxu0 %v692
        %v1357 = vpop.f32.mrb[0].mxu0
        %v1358 = vadd.f32 %v364, %v1357
        %v1359 = vpop.f32.mrb[0].mxu0
        %1360 = vmatprep.mubr.f32.mxu0 0.0
        %1361 = vmatmul.mubr.f32.gmra.mrb[0].mxu0 %v695
        %v1362 = vpop.f32.mrb[0].mxu0
        %v1363 = vadd.f32 %v364, %v1362
        %v1364 = vpop.f32.mrb[0].mxu0
        %1365 = vmatprep.mubr.f32.mxu0 0.0
        %1366 = vmatmul.mubr.f32.gmra.mrb[0].mxu0 %v698
        %v1367 = vpop.f32.mrb[0].mxu0
        %v1368 = vadd.f32 %v364, %v1367
        %v1369 = vpop.f32.mrb[0].mxu0
        %1370 = vmatprep.mubr.f32.mxu0 0.0
        %1371 = vmatmul.mubr.f32.gmra.mrb[0].mxu0 %v701
        %v1372 = vpop.f32.mrb[0].mxu0
        %v1373 = vadd.f32 %v364, %v1372
        %v1374 = vpop.f32.mrb[0].mxu0
        %1375 = vmatprep.mubr.f32.mxu0 0.0
        %1376 = vmatmul.mubr.f32.gmra.mrb[0].mxu0 %v704
        %v1377 = vpop.f32.mrb[0].mxu0
        %v1378 = vadd.f32 %v364, %v1377
        %v1379 = vpop.f32.mrb[0].mxu0
        %1380 = vmatprep.mubr.f32.mxu0 0.0
        %1381 = vmatmul.mubr.f32.gmra.mrb[0].mxu0 %v707
        %v1382 = vpop.f32.mrb[0].mxu0
        %v1383 = vadd.f32 %v364, %v1382
        %v1384 = vpop.f32.mrb[0].mxu0
        %1385 = vmatprep.mubr.f32.mxu0 0.0
        %1386 = vmatmul.mubr.f32.gmra.mrb[0].mxu0 %v710
        %v1387 = vpop.f32.mrb[0].mxu0
        %v1388 = vadd.f32 %v364, %v1387
        %v1389 = vpop.f32.mrb[0].mxu0
        %1390 = vmatprep.mubr.f32.mxu0 0.0
        %1391 = vmatmul.mubr.f32.gmra.mrb[0].mxu0 %v713
        %v1392 = vpop.f32.mrb[0].mxu0
        %v1393 = vadd.f32 %v364, %v1392
        %v1394 = vpop.f32.mrb[0].mxu0
        %1395 = vmatprep.mubr.f32.mxu0 0.0
        %1396 = vmatmul.mubr.f32.gmra.mrb[0].mxu0 %v716
        %v1397 = vpop.f32.mrb[0].mxu0
        %v1398 = vadd.f32 %v364, %v1397
        %v1399 = vpop.f32.mrb[0].mxu0
        %1400 = vmatprep.mubr.f32.mxu0 0.0
        %1401 = vmatmul.mubr.f32.gmra.mrb[0].mxu0 %v719
        %v1402 = vpop.f32.mrb[0].mxu0
        %v1403 = vadd.f32 %v364, %v1402
        %v1404 = vpop.f32.mrb[0].mxu0
        %1405 = vmatprep.mubr.f32.mxu0 0.0
        %1406 = vmatmul.mubr.f32.gmra.mrb[0].mxu0 %v722
        %v1407 = vpop.f32.mrb[0].mxu0
        %v1408 = vadd.f32 %v364, %v1407
        %v1409 = vpop.f32.mrb[0].mxu0
        %1410 = vmatprep.mubr.f32.mxu0 0.0
        %1411 = vmatmul.mubr.f32.gmra.mrb[0].mxu0 %v725
        %v1412 = vpop.f32.mrb[0].mxu0
        %v1413 = vadd.f32 %v364, %v1412
        %v1414 = vpop.f32.mrb[0].mxu0
        %1415 = vmatprep.mubr.f32.mxu0 0.0
        %1416 = vmatmul.mubr.f32.gmra.mrb[0].mxu0 %v728
        %v1417 = vpop.f32.mrb[0].mxu0
        %v1418 = vadd.f32 %v364, %v1417
        %v1419 = vpop.f32.mrb[0].mxu0
        %1420 = vmatprep.mubr.f32.mxu0 0.0
        %1421 = vmatmul.mubr.f32.gmra.mrb[0].mxu0 %v731
        %v1422 = vpop.f32.mrb[0].mxu0
        %v1423 = vadd.f32 %v364, %v1422
        %v1424 = vpop.f32.mrb[0].mxu0
        %1425 = vmatprep.mubr.f32.mxu0 0.0
        %1426 = vmatmul.mubr.f32.gmra.mrb[0].mxu0 %v734
        %v1427 = vpop.f32.mrb[0].mxu0
        %v1428 = vadd.f32 %v364, %v1427
        %v1429 = vpop.f32.mrb[0].mxu0
        %1430 = vmatprep.mubr.f32.mxu0 0.0
        %1431 = vmatmul.mubr.f32.gmra.mrb[0].mxu0 %v737
        %v1432 = vpop.f32.mrb[0].mxu0
        %v1433 = vadd.f32 %v364, %v1432
        %v1434 = vpop.f32.mrb[0].mxu0
        %1435 = vmatprep.mubr.f32.mxu0 0.0
        %1436 = vmatmul.mubr.f32.gmra.mrb[0].mxu0 %v740
        %v1437 = vpop.f32.mrb[0].mxu0
        %v1438 = vadd.f32 %v364, %v1437
        %v1439 = vpop.f32.mrb[0].mxu0
        %1440 = vmatprep.mubr.f32.mxu0 0.0
        %1441 = vmatmul.mubr.f32.gmra.mrb[0].mxu0 %v743
        %v1442 = vpop.f32.mrb[0].mxu0
        %v1443 = vadd.f32 %v364, %v1442
        %v1444 = vpop.f32.mrb[0].mxu0
        %1445 = vmatprep.mubr.f32.mxu0 0.0
        %1446 = vmatmul.mubr.f32.gmra.mrb[0].mxu0 %v746
        %v1447 = vpop.f32.mrb[0].mxu0
        %v1448 = vadd.f32 %v364, %v1447
        %v1449 = vpop.f32.mrb[0].mxu0
        %1450 = vmatprep.mubr.f32.mxu0 0.0
        %1451 = vmatmul.mubr.f32.gmra.mrb[0].mxu0 %v749
        %v1452 = vpop.f32.mrb[0].mxu0
        %v1453 = vadd.f32 %v364, %v1452
        %v1454 = vpop.f32.mrb[0].mxu0
        %1455 = vdwg.mxu0
        %v1456 = vmax.f32 %v818, 0.0
        %v1457 = vmax.f32 %v823, 0.0
        %v1458 = vmax.f32 %v828, 0.0
        %v1459 = vmax.f32 %v833, 0.0
        %v1460 = vmax.f32 %v838, 0.0
        %v1461 = vmax.f32 %v843, 0.0
        %v1462 = vmax.f32 %v848, 0.0
        %v1463 = vmax.f32 %v853, 0.0
        %v1464 = vmax.f32 %v858, 0.0
        %v1465 = vmax.f32 %v863, 0.0
        %v1466 = vmax.f32 %v868, 0.0
        %v1467 = vmax.f32 %v873, 0.0
        %v1468 = vmax.f32 %v878, 0.0
        %v1469 = vmax.f32 %v883, 0.0
        %v1470 = vmax.f32 %v888, 0.0
        %v1471 = vmax.f32 %v893, 0.0
        %v1472 = vmax.f32 %v898, 0.0
        %v1473 = vmax.f32 %v903, 0.0
        %v1474 = vmax.f32 %v908, 0.0
        %v1475 = vmax.f32 %v913, 0.0
        %v1476 = vmax.f32 %v918, 0.0
        %v1477 = vmax.f32 %v923, 0.0
        %v1478 = vmax.f32 %v928, 0.0
        %v1479 = vmax.f32 %v933, 0.0
        %v1480 = vmax.f32 %v938, 0.0
        %v1481 = vmax.f32 %v943, 0.0
        %v1482 = vmax.f32 %v948, 0.0
        %v1483 = vmax.f32 %v953, 0.0
        %v1484 = vmax.f32 %v958, 0.0
        %v1485 = vmax.f32 %v963, 0.0
        %v1486 = vmax.f32 %v968, 0.0
        %v1487 = vmax.f32 %v973, 0.0
        %v1488 = vmax.f32 %v978, 0.0
        %v1489 = vmax.f32 %v983, 0.0
        %v1490 = vmax.f32 %v988, 0.0
        %v1491 = vmax.f32 %v993, 0.0
        %v1492 = vmax.f32 %v998, 0.0
        %v1493 = vmax.f32 %v1003, 0.0
        %v1494 = vmax.f32 %v1008, 0.0
        %v1495 = vmax.f32 %v1013, 0.0
        %v1496 = vmax.f32 %v1018, 0.0
        %v1497 = vmax.f32 %v1023, 0.0
        %v1498 = vmax.f32 %v1028, 0.0
        %v1499 = vmax.f32 %v1033, 0.0
        %v1500 = vmax.f32 %v1038, 0.0
        %v1501 = vmax.f32 %v1043, 0.0
        %v1502 = vmax.f32 %v1048, 0.0
        %v1503 = vmax.f32 %v1053, 0.0
        %v1504 = vmax.f32 %v1058, 0.0
        %v1505 = vmax.f32 %v1063, 0.0
        %v1506 = vmax.f32 %v1068, 0.0
        %v1507 = vmax.f32 %v1073, 0.0
        %v1508 = vmax.f32 %v1078, 0.0
        %v1509 = vmax.f32 %v1083, 0.0
        %v1510 = vmax.f32 %v1088, 0.0
        %v1511 = vmax.f32 %v1093, 0.0
        %v1512 = vmax.f32 %v1098, 0.0
        %v1513 = vmax.f32 %v1103, 0.0
        %v1514 = vmax.f32 %v1108, 0.0
        %v1515 = vmax.f32 %v1113, 0.0
        %v1516 = vmax.f32 %v1118, 0.0
        %v1517 = vmax.f32 %v1123, 0.0
        %v1518 = vmax.f32 %v1128, 0.0
        %v1519 = vmax.f32 %v1133, 0.0
        %v1520 = vmax.f32 %v1138, 0.0
        %v1521 = vmax.f32 %v1143, 0.0
        %v1522 = vmax.f32 %v1148, 0.0
        %v1523 = vmax.f32 %v1153, 0.0
        %v1524 = vmax.f32 %v1158, 0.0
        %v1525 = vmax.f32 %v1163, 0.0
        %v1526 = vmax.f32 %v1168, 0.0
        %v1527 = vmax.f32 %v1173, 0.0
        %v1528 = vmax.f32 %v1178, 0.0
        %v1529 = vmax.f32 %v1183, 0.0
        %v1530 = vmax.f32 %v1188, 0.0
        %v1531 = vmax.f32 %v1193, 0.0
        %v1532 = vmax.f32 %v1198, 0.0
        %v1533 = vmax.f32 %v1203, 0.0
        %v1534 = vmax.f32 %v1208, 0.0
        %v1535 = vmax.f32 %v1213, 0.0
        %v1536 = vmax.f32 %v1218, 0.0
        %v1537 = vmax.f32 %v1223, 0.0
        %v1538 = vmax.f32 %v1228, 0.0
        %v1539 = vmax.f32 %v1233, 0.0
        %v1540 = vmax.f32 %v1238, 0.0
        %v1541 = vmax.f32 %v1243, 0.0
        %v1542 = vmax.f32 %v1248, 0.0
        %v1543 = vmax.f32 %v1253, 0.0
        %v1544 = vmax.f32 %v1258, 0.0
        %v1545 = vmax.f32 %v1263, 0.0
        %v1546 = vmax.f32 %v1268, 0.0
        %v1547 = vmax.f32 %v1273, 0.0
        %v1548 = vmax.f32 %v1278, 0.0
        %v1549 = vmax.f32 %v1283, 0.0
        %v1550 = vmax.f32 %v1288, 0.0
        %v1551 = vmax.f32 %v1293, 0.0
        %v1552 = vmax.f32 %v1298, 0.0
        %v1553 = vmax.f32 %v1303, 0.0
        %v1554 = vmax.f32 %v1308, 0.0
        %v1555 = vmax.f32 %v1313, 0.0
        %v1556 = vmax.f32 %v1318, 0.0
        %v1557 = vmax.f32 %v1323, 0.0
        %v1558 = vmax.f32 %v1328, 0.0
        %v1559 = vmax.f32 %v1333, 0.0
        %v1560 = vmax.f32 %v1338, 0.0
        %v1561 = vmax.f32 %v1343, 0.0
        %v1562 = vmax.f32 %v1348, 0.0
        %v1563 = vmax.f32 %v1353, 0.0
        %v1564 = vmax.f32 %v1358, 0.0
        %v1565 = vmax.f32 %v1363, 0.0
        %v1566 = vmax.f32 %v1368, 0.0
        %v1567 = vmax.f32 %v1373, 0.0
        %v1568 = vmax.f32 %v1378, 0.0
        %v1569 = vmax.f32 %v1383, 0.0
        %v1570 = vmax.f32 %v1388, 0.0
        %v1571 = vmax.f32 %v1393, 0.0
        %v1572 = vmax.f32 %v1398, 0.0
        %v1573 = vmax.f32 %v1403, 0.0
        %v1574 = vmax.f32 %v1408, 0.0
        %v1575 = vmax.f32 %v1413, 0.0
        %v1576 = vmax.f32 %v1418, 0.0
        %v1577 = vmax.f32 %v1423, 0.0
        %v1578 = vmax.f32 %v1428, 0.0
        %v1579 = vmax.f32 %v1433, 0.0
        %v1580 = vmax.f32 %v1438, 0.0
        %v1581 = vmax.f32 %v1443, 0.0
        %v1582 = vmax.f32 %v1448, 0.0
        %v1583 = vmax.f32 %v1453, 0.0
        %v1584 = vld [vmem:[%s3] sm:$0x1]
        %v1586 = vlaneseq
        %v1587 = vshrl.u32 %v1586, 7
        %v1588 = vsub.s32 0, %v1587
        %v1589 = vrot.slane %v1584, %v1588
        %v1591 = vmul.f32 %v1456, %v1589
        %v1592 = vmul.f32 %v1457, %v1589
        %v1593 = vmul.f32 %v1458, %v1589
        %v1594 = vmul.f32 %v1459, %v1589
        %v1595 = vmul.f32 %v1460, %v1589
        %v1596 = vmul.f32 %v1461, %v1589
        %v1597 = vmul.f32 %v1462, %v1589
        %v1598 = vmul.f32 %v1463, %v1589
        %v1599 = vmul.f32 %v1464, %v1589
        %v1600 = vmul.f32 %v1465, %v1589
        %v1601 = vmul.f32 %v1466, %v1589
        %v1602 = vmul.f32 %v1467, %v1589
        %v1603 = vmul.f32 %v1468, %v1589
        %v1604 = vmul.f32 %v1469, %v1589
        %v1605 = vmul.f32 %v1470, %v1589
        %v1606 = vmul.f32 %v1471, %v1589
        %v1607 = vmul.f32 %v1472, %v1589
        %v1608 = vmul.f32 %v1473, %v1589
        %v1609 = vmul.f32 %v1474, %v1589
        %v1610 = vmul.f32 %v1475, %v1589
        %v1611 = vmul.f32 %v1476, %v1589
        %v1612 = vmul.f32 %v1477, %v1589
        %v1613 = vmul.f32 %v1478, %v1589
        %v1614 = vmul.f32 %v1479, %v1589
        %v1615 = vmul.f32 %v1480, %v1589
        %v1616 = vmul.f32 %v1481, %v1589
        %v1617 = vmul.f32 %v1482, %v1589
        %v1618 = vmul.f32 %v1483, %v1589
        %v1619 = vmul.f32 %v1484, %v1589
        %v1620 = vmul.f32 %v1485, %v1589
        %v1621 = vmul.f32 %v1486, %v1589
        %v1622 = vmul.f32 %v1487, %v1589
        %v1623 = vmul.f32 %v1488, %v1589
        %v1624 = vmul.f32 %v1489, %v1589
        %v1625 = vmul.f32 %v1490, %v1589
        %v1626 = vmul.f32 %v1491, %v1589
        %v1627 = vmul.f32 %v1492, %v1589
        %v1628 = vmul.f32 %v1493, %v1589
        %v1629 = vmul.f32 %v1494, %v1589
        %v1630 = vmul.f32 %v1495, %v1589
        %v1631 = vmul.f32 %v1496, %v1589
        %v1632 = vmul.f32 %v1497, %v1589
        %v1633 = vmul.f32 %v1498, %v1589
        %v1634 = vmul.f32 %v1499, %v1589
        %v1635 = vmul.f32 %v1500, %v1589
        %v1636 = vmul.f32 %v1501, %v1589
        %v1637 = vmul.f32 %v1502, %v1589
        %v1638 = vmul.f32 %v1503, %v1589
        %v1639 = vmul.f32 %v1504, %v1589
        %v1640 = vmul.f32 %v1505, %v1589
        %v1641 = vmul.f32 %v1506, %v1589
        %v1642 = vmul.f32 %v1507, %v1589
        %v1643 = vmul.f32 %v1508, %v1589
        %v1644 = vmul.f32 %v1509, %v1589
        %v1645 = vmul.f32 %v1510, %v1589
        %v1646 = vmul.f32 %v1511, %v1589
        %v1647 = vmul.f32 %v1512, %v1589
        %v1648 = vmul.f32 %v1513, %v1589
        %v1649 = vmul.f32 %v1514, %v1589
        %v1650 = vmul.f32 %v1515, %v1589
        %v1651 = vmul.f32 %v1516, %v1589
        %v1652 = vmul.f32 %v1517, %v1589
        %v1653 = vmul.f32 %v1518, %v1589
        %v1654 = vmul.f32 %v1519, %v1589
        %v1655 = vmul.f32 %v1520, %v1589
        %v1656 = vmul.f32 %v1521, %v1589
        %v1657 = vmul.f32 %v1522, %v1589
        %v1658 = vmul.f32 %v1523, %v1589
        %v1659 = vmul.f32 %v1524, %v1589
        %v1660 = vmul.f32 %v1525, %v1589
        %v1661 = vmul.f32 %v1526, %v1589
        %v1662 = vmul.f32 %v1527, %v1589
        %v1663 = vmul.f32 %v1528, %v1589
        %v1664 = vmul.f32 %v1529, %v1589
        %v1665 = vmul.f32 %v1530, %v1589
        %v1666 = vmul.f32 %v1531, %v1589
        %v1667 = vmul.f32 %v1532, %v1589
        %v1668 = vmul.f32 %v1533, %v1589
        %v1669 = vmul.f32 %v1534, %v1589
        %v1670 = vmul.f32 %v1535, %v1589
        %v1671 = vmul.f32 %v1536, %v1589
        %v1672 = vmul.f32 %v1537, %v1589
        %v1673 = vmul.f32 %v1538, %v1589
        %v1674 = vmul.f32 %v1539, %v1589
        %v1675 = vmul.f32 %v1540, %v1589
        %v1676 = vmul.f32 %v1541, %v1589
        %v1677 = vmul.f32 %v1542, %v1589
        %v1678 = vmul.f32 %v1543, %v1589
        %v1679 = vmul.f32 %v1544, %v1589
        %v1680 = vmul.f32 %v1545, %v1589
        %v1681 = vmul.f32 %v1546, %v1589
        %v1682 = vmul.f32 %v1547, %v1589
        %v1683 = vmul.f32 %v1548, %v1589
        %v1684 = vmul.f32 %v1549, %v1589
        %v1685 = vmul.f32 %v1550, %v1589
        %v1686 = vmul.f32 %v1551, %v1589
        %v1687 = vmul.f32 %v1552, %v1589
        %v1688 = vmul.f32 %v1553, %v1589
        %v1689 = vmul.f32 %v1554, %v1589
        %v1690 = vmul.f32 %v1555, %v1589
        %v1691 = vmul.f32 %v1556, %v1589
        %v1692 = vmul.f32 %v1557, %v1589
        %v1693 = vmul.f32 %v1558, %v1589
        %v1694 = vmul.f32 %v1559, %v1589
        %v1695 = vmul.f32 %v1560, %v1589
        %v1696 = vmul.f32 %v1561, %v1589
        %v1697 = vmul.f32 %v1562, %v1589
        %v1698 = vmul.f32 %v1563, %v1589
        %v1699 = vmul.f32 %v1564, %v1589
        %v1700 = vmul.f32 %v1565, %v1589
        %v1701 = vmul.f32 %v1566, %v1589
        %v1702 = vmul.f32 %v1567, %v1589
        %v1703 = vmul.f32 %v1568, %v1589
        %v1704 = vmul.f32 %v1569, %v1589
        %v1705 = vmul.f32 %v1570, %v1589
        %v1706 = vmul.f32 %v1571, %v1589
        %v1707 = vmul.f32 %v1572, %v1589
        %v1708 = vmul.f32 %v1573, %v1589
        %v1709 = vmul.f32 %v1574, %v1589
        %v1710 = vmul.f32 %v1575, %v1589
        %v1711 = vmul.f32 %v1576, %v1589
        %v1712 = vmul.f32 %v1577, %v1589
        %v1713 = vmul.f32 %v1578, %v1589
        %v1714 = vmul.f32 %v1579, %v1589
        %v1715 = vmul.f32 %v1580, %v1589
        %v1716 = vmul.f32 %v1581, %v1589
        %v1717 = vmul.f32 %v1582, %v1589
        %v1718 = vmul.f32 %v1583, %v1589
        %1719 = vxpose.xlu0.b32.start [1/16] %v1591, 128
        %1720 = vxpose.xlu0.b32.cont [2/16] %v1592, 128
        %1721 = vxpose.xlu0.b32.cont [3/16] %v1593, 128
        %1722 = vxpose.xlu0.b32.cont [4/16] %v1594, 128
        %1723 = vxpose.xlu0.b32.cont [5/16] %v1595, 128
        %1724 = vxpose.xlu0.b32.cont [6/16] %v1596, 128
        %1725 = vxpose.xlu0.b32.cont [7/16] %v1597, 128
        %1726 = vxpose.xlu0.b32.cont [8/16] %v1598, 128
        %1727 = vxpose.xlu0.b32.cont [9/16] %v1599, 128
        %1728 = vxpose.xlu0.b32.cont [10/16] %v1600, 128
        %1729 = vxpose.xlu0.b32.cont [11/16] %v1601, 128
        %1730 = vxpose.xlu0.b32.cont [12/16] %v1602, 128
        %1731 = vxpose.xlu0.b32.cont [13/16] %v1603, 128
        %1732 = vxpose.xlu0.b32.cont [14/16] %v1604, 128
        %1733 = vxpose.xlu0.b32.cont [15/16] %v1605, 128
        %1734 = vxpose.xlu0.b32.end [16/16] %v1606, 128
        %v1735 = vpop.trf.xlu0
        %v1736 = vpop.trf.xlu0
        %v1737 = vpop.trf.xlu0
        %v1738 = vpop.trf.xlu0
        %v1739 = vpop.trf.xlu0
        %v1740 = vpop.trf.xlu0
        %v1741 = vpop.trf.xlu0
        %v1742 = vpop.trf.xlu0
        %v1743 = vpop.trf.xlu0
        %v1744 = vpop.trf.xlu0
        %v1745 = vpop.trf.xlu0
        %v1746 = vpop.trf.xlu0
        %v1747 = vpop.trf.xlu0
        %v1748 = vpop.trf.xlu0
        %v1749 = vpop.trf.xlu0
        %v1750 = vpop.trf.xlu0
        %1751 = vxpose.xlu0.b32.start [1/16] %v1607, 128
        %1752 = vxpose.xlu0.b32.cont [2/16] %v1608, 128
        %1753 = vxpose.xlu0.b32.cont [3/16] %v1609, 128
        %1754 = vxpose.xlu0.b32.cont [4/16] %v1610, 128
        %1755 = vxpose.xlu0.b32.cont [5/16] %v1611, 128
        %1756 = vxpose.xlu0.b32.cont [6/16] %v1612, 128
        %1757 = vxpose.xlu0.b32.cont [7/16] %v1613, 128
        %1758 = vxpose.xlu0.b32.cont [8/16] %v1614, 128
        %1759 = vxpose.xlu0.b32.cont [9/16] %v1615, 128
        %1760 = vxpose.xlu0.b32.cont [10/16] %v1616, 128
        %1761 = vxpose.xlu0.b32.cont [11/16] %v1617, 128
        %1762 = vxpose.xlu0.b32.cont [12/16] %v1618, 128
        %1763 = vxpose.xlu0.b32.cont [13/16] %v1619, 128
        %1764 = vxpose.xlu0.b32.cont [14/16] %v1620, 128
        %1765 = vxpose.xlu0.b32.cont [15/16] %v1621, 128
        %1766 = vxpose.xlu0.b32.end [16/16] %v1622, 128
        %v1767 = vpop.trf.xlu0
        %v1768 = vpop.trf.xlu0
        %v1769 = vpop.trf.xlu0
        %v1770 = vpop.trf.xlu0
        %v1771 = vpop.trf.xlu0
        %v1772 = vpop.trf.xlu0
        %v1773 = vpop.trf.xlu0
        %v1774 = vpop.trf.xlu0
        %v1775 = vpop.trf.xlu0
        %v1776 = vpop.trf.xlu0
        %v1777 = vpop.trf.xlu0
        %v1778 = vpop.trf.xlu0
        %v1779 = vpop.trf.xlu0
        %v1780 = vpop.trf.xlu0
        %v1781 = vpop.trf.xlu0
        %v1782 = vpop.trf.xlu0
        %1783 = vxpose.xlu0.b32.start [1/16] %v1623, 128
        %1784 = vxpose.xlu0.b32.cont [2/16] %v1624, 128
        %1785 = vxpose.xlu0.b32.cont [3/16] %v1625, 128
        %1786 = vxpose.xlu0.b32.cont [4/16] %v1626, 128
        %1787 = vxpose.xlu0.b32.cont [5/16] %v1627, 128
        %1788 = vxpose.xlu0.b32.cont [6/16] %v1628, 128
        %1789 = vxpose.xlu0.b32.cont [7/16] %v1629, 128
        %1790 = vxpose.xlu0.b32.cont [8/16] %v1630, 128
        %1791 = vxpose.xlu0.b32.cont [9/16] %v1631, 128
        %1792 = vxpose.xlu0.b32.cont [10/16] %v1632, 128
        %1793 = vxpose.xlu0.b32.cont [11/16] %v1633, 128
        %1794 = vxpose.xlu0.b32.cont [12/16] %v1634, 128
        %1795 = vxpose.xlu0.b32.cont [13/16] %v1635, 128
        %1796 = vxpose.xlu0.b32.cont [14/16] %v1636, 128
        %1797 = vxpose.xlu0.b32.cont [15/16] %v1637, 128
        %1798 = vxpose.xlu0.b32.end [16/16] %v1638, 128
        %v1799 = vpop.trf.xlu0
        %v1800 = vpop.trf.xlu0
        %v1801 = vpop.trf.xlu0
        %v1802 = vpop.trf.xlu0
        %v1803 = vpop.trf.xlu0
        %v1804 = vpop.trf.xlu0
        %v1805 = vpop.trf.xlu0
        %v1806 = vpop.trf.xlu0
        %v1807 = vpop.trf.xlu0
        %v1808 = vpop.trf.xlu0
        %v1809 = vpop.trf.xlu0
        %v1810 = vpop.trf.xlu0
        %v1811 = vpop.trf.xlu0
        %v1812 = vpop.trf.xlu0
        %v1813 = vpop.trf.xlu0
        %v1814 = vpop.trf.xlu0
        %1815 = vxpose.xlu0.b32.start [1/16] %v1639, 128
        %1816 = vxpose.xlu0.b32.cont [2/16] %v1640, 128
        %1817 = vxpose.xlu0.b32.cont [3/16] %v1641, 128
        %1818 = vxpose.xlu0.b32.cont [4/16] %v1642, 128
        %1819 = vxpose.xlu0.b32.cont [5/16] %v1643, 128
        %1820 = vxpose.xlu0.b32.cont [6/16] %v1644, 128
        %1821 = vxpose.xlu0.b32.cont [7/16] %v1645, 128
        %1822 = vxpose.xlu0.b32.cont [8/16] %v1646, 128
        %1823 = vxpose.xlu0.b32.cont [9/16] %v1647, 128
        %1824 = vxpose.xlu0.b32.cont [10/16] %v1648, 128
        %1825 = vxpose.xlu0.b32.cont [11/16] %v1649, 128
        %1826 = vxpose.xlu0.b32.cont [12/16] %v1650, 128
        %1827 = vxpose.xlu0.b32.cont [13/16] %v1651, 128
        %1828 = vxpose.xlu0.b32.cont [14/16] %v1652, 128
        %1829 = vxpose.xlu0.b32.cont [15/16] %v1653, 128
        %1830 = vxpose.xlu0.b32.end [16/16] %v1654, 128
        %v1831 = vpop.trf.xlu0
        %v1832 = vpop.trf.xlu0
        %v1833 = vpop.trf.xlu0
        %v1834 = vpop.trf.xlu0
        %v1835 = vpop.trf.xlu0
        %v1836 = vpop.trf.xlu0
        %v1837 = vpop.trf.xlu0
        %v1838 = vpop.trf.xlu0
        %v1839 = vpop.trf.xlu0
        %v1840 = vpop.trf.xlu0
        %v1841 = vpop.trf.xlu0
        %v1842 = vpop.trf.xlu0
        %v1843 = vpop.trf.xlu0
        %v1844 = vpop.trf.xlu0
        %v1845 = vpop.trf.xlu0
        %v1846 = vpop.trf.xlu0
        %1847 = vxpose.xlu0.b32.start [1/16] %v1655, 128
        %1848 = vxpose.xlu0.b32.cont [2/16] %v1656, 128
        %1849 = vxpose.xlu0.b32.cont [3/16] %v1657, 128
        %1850 = vxpose.xlu0.b32.cont [4/16] %v1658, 128
        %1851 = vxpose.xlu0.b32.cont [5/16] %v1659, 128
        %1852 = vxpose.xlu0.b32.cont [6/16] %v1660, 128
        %1853 = vxpose.xlu0.b32.cont [7/16] %v1661, 128
        %1854 = vxpose.xlu0.b32.cont [8/16] %v1662, 128
        %1855 = vxpose.xlu0.b32.cont [9/16] %v1663, 128
        %1856 = vxpose.xlu0.b32.cont [10/16] %v1664, 128
        %1857 = vxpose.xlu0.b32.cont [11/16] %v1665, 128
        %1858 = vxpose.xlu0.b32.cont [12/16] %v1666, 128
        %1859 = vxpose.xlu0.b32.cont [13/16] %v1667, 128
        %1860 = vxpose.xlu0.b32.cont [14/16] %v1668, 128
        %1861 = vxpose.xlu0.b32.cont [15/16] %v1669, 128
        %1862 = vxpose.xlu0.b32.end [16/16] %v1670, 128
        %v1863 = vpop.trf.xlu0
        %v1864 = vpop.trf.xlu0
        %v1865 = vpop.trf.xlu0
        %v1866 = vpop.trf.xlu0
        %v1867 = vpop.trf.xlu0
        %v1868 = vpop.trf.xlu0
        %v1869 = vpop.trf.xlu0
        %v1870 = vpop.trf.xlu0
        %v1871 = vpop.trf.xlu0
        %v1872 = vpop.trf.xlu0
        %v1873 = vpop.trf.xlu0
        %v1874 = vpop.trf.xlu0
        %v1875 = vpop.trf.xlu0
        %v1876 = vpop.trf.xlu0
        %v1877 = vpop.trf.xlu0
        %v1878 = vpop.trf.xlu0
        %1879 = vxpose.xlu0.b32.start [1/16] %v1671, 128
        %1880 = vxpose.xlu0.b32.cont [2/16] %v1672, 128
        %1881 = vxpose.xlu0.b32.cont [3/16] %v1673, 128
        %1882 = vxpose.xlu0.b32.cont [4/16] %v1674, 128
        %1883 = vxpose.xlu0.b32.cont [5/16] %v1675, 128
        %1884 = vxpose.xlu0.b32.cont [6/16] %v1676, 128
        %1885 = vxpose.xlu0.b32.cont [7/16] %v1677, 128
        %1886 = vxpose.xlu0.b32.cont [8/16] %v1678, 128
        %1887 = vxpose.xlu0.b32.cont [9/16] %v1679, 128
        %1888 = vxpose.xlu0.b32.cont [10/16] %v1680, 128
        %1889 = vxpose.xlu0.b32.cont [11/16] %v1681, 128
        %1890 = vxpose.xlu0.b32.cont [12/16] %v1682, 128
        %1891 = vxpose.xlu0.b32.cont [13/16] %v1683, 128
        %1892 = vxpose.xlu0.b32.cont [14/16] %v1684, 128
        %1893 = vxpose.xlu0.b32.cont [15/16] %v1685, 128
        %1894 = vxpose.xlu0.b32.end [16/16] %v1686, 128
        %v1895 = vpop.trf.xlu0
        %v1896 = vpop.trf.xlu0
        %v1897 = vpop.trf.xlu0
        %v1898 = vpop.trf.xlu0
        %v1899 = vpop.trf.xlu0
        %v1900 = vpop.trf.xlu0
        %v1901 = vpop.trf.xlu0
        %v1902 = vpop.trf.xlu0
        %v1903 = vpop.trf.xlu0
        %v1904 = vpop.trf.xlu0
        %v1905 = vpop.trf.xlu0
        %v1906 = vpop.trf.xlu0
        %v1907 = vpop.trf.xlu0
        %v1908 = vpop.trf.xlu0
        %v1909 = vpop.trf.xlu0
        %v1910 = vpop.trf.xlu0
        %1911 = vxpose.xlu0.b32.start [1/16] %v1687, 128
        %1912 = vxpose.xlu0.b32.cont [2/16] %v1688, 128
        %1913 = vxpose.xlu0.b32.cont [3/16] %v1689, 128
        %1914 = vxpose.xlu0.b32.cont [4/16] %v1690, 128
        %1915 = vxpose.xlu0.b32.cont [5/16] %v1691, 128
        %1916 = vxpose.xlu0.b32.cont [6/16] %v1692, 128
        %1917 = vxpose.xlu0.b32.cont [7/16] %v1693, 128
        %1918 = vxpose.xlu0.b32.cont [8/16] %v1694, 128
        %1919 = vxpose.xlu0.b32.cont [9/16] %v1695, 128
        %1920 = vxpose.xlu0.b32.cont [10/16] %v1696, 128
        %1921 = vxpose.xlu0.b32.cont [11/16] %v1697, 128
        %1922 = vxpose.xlu0.b32.cont [12/16] %v1698, 128
        %1923 = vxpose.xlu0.b32.cont [13/16] %v1699, 128
        %1924 = vxpose.xlu0.b32.cont [14/16] %v1700, 128
        %1925 = vxpose.xlu0.b32.cont [15/16] %v1701, 128
        %1926 = vxpose.xlu0.b32.end [16/16] %v1702, 128
        %v1927 = vpop.trf.xlu0
        %v1928 = vpop.trf.xlu0
        %v1929 = vpop.trf.xlu0
        %v1930 = vpop.trf.xlu0
        %v1931 = vpop.trf.xlu0
        %v1932 = vpop.trf.xlu0
        %v1933 = vpop.trf.xlu0
        %v1934 = vpop.trf.xlu0
        %v1935 = vpop.trf.xlu0
        %v1936 = vpop.trf.xlu0
        %v1937 = vpop.trf.xlu0
        %v1938 = vpop.trf.xlu0
        %v1939 = vpop.trf.xlu0
        %v1940 = vpop.trf.xlu0
        %v1941 = vpop.trf.xlu0
        %v1942 = vpop.trf.xlu0
        %1943 = vxpose.xlu0.b32.start [1/16] %v1703, 128
        %1944 = vxpose.xlu0.b32.cont [2/16] %v1704, 128
        %1945 = vxpose.xlu0.b32.cont [3/16] %v1705, 128
        %1946 = vxpose.xlu0.b32.cont [4/16] %v1706, 128
        %1947 = vxpose.xlu0.b32.cont [5/16] %v1707, 128
        %1948 = vxpose.xlu0.b32.cont [6/16] %v1708, 128
        %1949 = vxpose.xlu0.b32.cont [7/16] %v1709, 128
        %1950 = vxpose.xlu0.b32.cont [8/16] %v1710, 128
        %1951 = vxpose.xlu0.b32.cont [9/16] %v1711, 128
        %1952 = vxpose.xlu0.b32.cont [10/16] %v1712, 128
        %1953 = vxpose.xlu0.b32.cont [11/16] %v1713, 128
        %1954 = vxpose.xlu0.b32.cont [12/16] %v1714, 128
        %1955 = vxpose.xlu0.b32.cont [13/16] %v1715, 128
        %1956 = vxpose.xlu0.b32.cont [14/16] %v1716, 128
        %1957 = vxpose.xlu0.b32.cont [15/16] %v1717, 128
        %1958 = vxpose.xlu0.b32.end [16/16] %v1718, 128
        %v1959 = vpop.trf.xlu0
        %v1960 = vpop.trf.xlu0
        %v1961 = vpop.trf.xlu0
        %v1962 = vpop.trf.xlu0
        %v1963 = vpop.trf.xlu0
        %v1964 = vpop.trf.xlu0
        %v1965 = vpop.trf.xlu0
        %v1966 = vpop.trf.xlu0
        %v1967 = vpop.trf.xlu0
        %v1968 = vpop.trf.xlu0
        %v1969 = vpop.trf.xlu0
        %v1970 = vpop.trf.xlu0
        %v1971 = vpop.trf.xlu0
        %v1972 = vpop.trf.xlu0
        %v1973 = vpop.trf.xlu0
        %v1974 = vpop.trf.xlu0
        %v1975 = vadd.f32 %v1735, %v1736
        %v1976 = vadd.f32 %v1975, %v1737
        %v1977 = vadd.f32 %v1976, %v1738
        %v1978 = vadd.f32 %v1977, %v1739
        %v1979 = vadd.f32 %v1978, %v1740
        %v1980 = vadd.f32 %v1979, %v1741
        %v1981 = vadd.f32 %v1980, %v1742
        %v1982 = vadd.f32 %v1981, %v1743
        %v1983 = vadd.f32 %v1982, %v1744
        %v1984 = vadd.f32 %v1983, %v1745
        %v1985 = vadd.f32 %v1984, %v1746
        %v1986 = vadd.f32 %v1985, %v1747
        %v1987 = vadd.f32 %v1986, %v1748
        %v1988 = vadd.f32 %v1987, %v1749
        %v1989 = vadd.f32 %v1988, %v1750
        %v1990 = vrot.slane %v1989, 4
        %v1991 = vadd.f32 %v1989, %v1990
        %v1992 = vrot.slane %v1991, 2
        %v1993 = vadd.f32 %v1991, %v1992
        %v1994 = vrot.slane %v1993, 1
        %v1995 = vadd.f32 %v1993, %v1994
        %v1996 = vadd.f32 %v1767, %v1768
        %v1997 = vadd.f32 %v1996, %v1769
        %v1998 = vadd.f32 %v1997, %v1770
        %v1999 = vadd.f32 %v1998, %v1771
        %v2000 = vadd.f32 %v1999, %v1772
        %v2001 = vadd.f32 %v2000, %v1773
        %v2002 = vadd.f32 %v2001, %v1774
        %v2003 = vadd.f32 %v2002, %v1775
        %v2004 = vadd.f32 %v2003, %v1776
        %v2005 = vadd.f32 %v2004, %v1777
        %v2006 = vadd.f32 %v2005, %v1778
        %v2007 = vadd.f32 %v2006, %v1779
        %v2008 = vadd.f32 %v2007, %v1780
        %v2009 = vadd.f32 %v2008, %v1781
        %v2010 = vadd.f32 %v2009, %v1782
        %v2011 = vrot.slane %v2010, 4
        %v2012 = vadd.f32 %v2010, %v2011
        %v2013 = vrot.slane %v2012, 2
        %v2014 = vadd.f32 %v2012, %v2013
        %v2015 = vrot.slane %v2014, 1
        %v2016 = vadd.f32 %v2014, %v2015
        %v2017 = vadd.f32 %v1799, %v1800
        %v2018 = vadd.f32 %v2017, %v1801
        %v2019 = vadd.f32 %v2018, %v1802
        %v2020 = vadd.f32 %v2019, %v1803
        %v2021 = vadd.f32 %v2020, %v1804
        %v2022 = vadd.f32 %v2021, %v1805
        %v2023 = vadd.f32 %v2022, %v1806
        %v2024 = vadd.f32 %v2023, %v1807
        %v2025 = vadd.f32 %v2024, %v1808
        %v2026 = vadd.f32 %v2025, %v1809
        %v2027 = vadd.f32 %v2026, %v1810
        %v2028 = vadd.f32 %v2027, %v1811
        %v2029 = vadd.f32 %v2028, %v1812
        %v2030 = vadd.f32 %v2029, %v1813
        %v2031 = vadd.f32 %v2030, %v1814
        %v2032 = vrot.slane %v2031, 4
        %v2033 = vadd.f32 %v2031, %v2032
        %v2034 = vrot.slane %v2033, 2
        %v2035 = vadd.f32 %v2033, %v2034
        %v2036 = vrot.slane %v2035, 1
        %v2037 = vadd.f32 %v2035, %v2036
        %v2038 = vadd.f32 %v1831, %v1832
        %v2039 = vadd.f32 %v2038, %v1833
        %v2040 = vadd.f32 %v2039, %v1834
        %v2041 = vadd.f32 %v2040, %v1835
        %v2042 = vadd.f32 %v2041, %v1836
        %v2043 = vadd.f32 %v2042, %v1837
        %v2044 = vadd.f32 %v2043, %v1838
        %v2045 = vadd.f32 %v2044, %v1839
        %v2046 = vadd.f32 %v2045, %v1840
        %v2047 = vadd.f32 %v2046, %v1841
        %v2048 = vadd.f32 %v2047, %v1842
        %v2049 = vadd.f32 %v2048, %v1843
        %v2050 = vadd.f32 %v2049, %v1844
        %v2051 = vadd.f32 %v2050, %v1845
        %v2052 = vadd.f32 %v2051, %v1846
        %v2053 = vrot.slane %v2052, 4
        %v2054 = vadd.f32 %v2052, %v2053
        %v2055 = vrot.slane %v2054, 2
        %v2056 = vadd.f32 %v2054, %v2055
        %v2057 = vrot.slane %v2056, 1
        %v2058 = vadd.f32 %v2056, %v2057
        %v2059 = vadd.f32 %v1863, %v1864
        %v2060 = vadd.f32 %v2059, %v1865
        %v2061 = vadd.f32 %v2060, %v1866
        %v2062 = vadd.f32 %v2061, %v1867
        %v2063 = vadd.f32 %v2062, %v1868
        %v2064 = vadd.f32 %v2063, %v1869
        %v2065 = vadd.f32 %v2064, %v1870
        %v2066 = vadd.f32 %v2065, %v1871
        %v2067 = vadd.f32 %v2066, %v1872
        %v2068 = vadd.f32 %v2067, %v1873
        %v2069 = vadd.f32 %v2068, %v1874
        %v2070 = vadd.f32 %v2069, %v1875
        %v2071 = vadd.f32 %v2070, %v1876
        %v2072 = vadd.f32 %v2071, %v1877
        %v2073 = vadd.f32 %v2072, %v1878
        %v2074 = vrot.slane %v2073, 4
        %v2075 = vadd.f32 %v2073, %v2074
        %v2076 = vrot.slane %v2075, 2
        %v2077 = vadd.f32 %v2075, %v2076
        %v2078 = vrot.slane %v2077, 1
        %v2079 = vadd.f32 %v2077, %v2078
        %v2080 = vadd.f32 %v1895, %v1896
        %v2081 = vadd.f32 %v2080, %v1897
        %v2082 = vadd.f32 %v2081, %v1898
        %v2083 = vadd.f32 %v2082, %v1899
        %v2084 = vadd.f32 %v2083, %v1900
        %v2085 = vadd.f32 %v2084, %v1901
        %v2086 = vadd.f32 %v2085, %v1902
        %v2087 = vadd.f32 %v2086, %v1903
        %v2088 = vadd.f32 %v2087, %v1904
        %v2089 = vadd.f32 %v2088, %v1905
        %v2090 = vadd.f32 %v2089, %v1906
        %v2091 = vadd.f32 %v2090, %v1907
        %v2092 = vadd.f32 %v2091, %v1908
        %v2093 = vadd.f32 %v2092, %v1909
        %v2094 = vadd.f32 %v2093, %v1910
        %v2095 = vrot.slane %v2094, 4
        %v2096 = vadd.f32 %v2094, %v2095
        %v2097 = vrot.slane %v2096, 2
        %v2098 = vadd.f32 %v2096, %v2097
        %v2099 = vrot.slane %v2098, 1
        %v2100 = vadd.f32 %v2098, %v2099
        %v2101 = vadd.f32 %v1927, %v1928
        %v2102 = vadd.f32 %v2101, %v1929
        %v2103 = vadd.f32 %v2102, %v1930
        %v2104 = vadd.f32 %v2103, %v1931
        %v2105 = vadd.f32 %v2104, %v1932
        %v2106 = vadd.f32 %v2105, %v1933
        %v2107 = vadd.f32 %v2106, %v1934
        %v2108 = vadd.f32 %v2107, %v1935
        %v2109 = vadd.f32 %v2108, %v1936
        %v2110 = vadd.f32 %v2109, %v1937
        %v2111 = vadd.f32 %v2110, %v1938
        %v2112 = vadd.f32 %v2111, %v1939
        %v2113 = vadd.f32 %v2112, %v1940
        %v2114 = vadd.f32 %v2113, %v1941
        %v2115 = vadd.f32 %v2114, %v1942
        %v2116 = vrot.slane %v2115, 4
        %v2117 = vadd.f32 %v2115, %v2116
        %v2118 = vrot.slane %v2117, 2
        %v2119 = vadd.f32 %v2117, %v2118
        %v2120 = vrot.slane %v2119, 1
        %v2121 = vadd.f32 %v2119, %v2120
        %v2122 = vadd.f32 %v1959, %v1960
        %v2123 = vadd.f32 %v2122, %v1961
        %v2124 = vadd.f32 %v2123, %v1962
        %v2125 = vadd.f32 %v2124, %v1963
        %v2126 = vadd.f32 %v2125, %v1964
        %v2127 = vadd.f32 %v2126, %v1965
        %v2128 = vadd.f32 %v2127, %v1966
        %v2129 = vadd.f32 %v2128, %v1967
        %v2130 = vadd.f32 %v2129, %v1968
        %v2131 = vadd.f32 %v2130, %v1969
        %v2132 = vadd.f32 %v2131, %v1970
        %v2133 = vadd.f32 %v2132, %v1971
        %v2134 = vadd.f32 %v2133, %v1972
        %v2135 = vadd.f32 %v2134, %v1973
        %v2136 = vadd.f32 %v2135, %v1974
        %v2137 = vrot.slane %v2136, 4
        %v2138 = vadd.f32 %v2136, %v2137
        %v2139 = vrot.slane %v2138, 2
        %v2140 = vadd.f32 %v2138, %v2139
        %v2141 = vrot.slane %v2140, 1
        %v2142 = vadd.f32 %v2140, %v2141
        %v2143 = vld [vmem:[#allocation2] sm:$0x1]
        %2145 = vset.pattern.permute.xlu0 0
        %2146 = vperm.xlu0 %2145, %v2143
        %v2147 = vpop.permute.xlu0 %2146
        %v2149 = vlaneseq
        %v2150 = vshrl.u32 %v2149, 7
        %v2151 = vsub.s32 0, %v2150
        %v2152 = vrot.slane %v2147, %v2151
        %v2153 = vadd.f32 %v1995, %v2152
        %v2154 = vadd.f32 %v2016, %v2152
        %v2155 = vadd.f32 %v2037, %v2152
        %v2156 = vadd.f32 %v2058, %v2152
        %v2157 = vadd.f32 %v2079, %v2152
        %v2158 = vadd.f32 %v2100, %v2152
        %v2159 = vadd.f32 %v2121, %v2152
        %v2160 = vadd.f32 %v2142, %v2152
        %v2169 = vcombine.low %v2153, %v2154
        %v2170 = vcombine.low %v2155, %v2156
        %v2171 = vcombine.low %v2157, %v2158
        %v2172 = vcombine.low %v2159, %v2160
        %v2174 = vunpack.c.l.s4 1966171168
        %v2175 = vunpack.c.0.s8 %v2174
        %v2176 = vlaneseq
        %v2177 = vshrl.u32 %v2176, 7
        %v2178 = vsub.s32 %v2175, %v2177
        %v2179 = vrot.slane %v2169, %v2178
        %v2181 = vunpack.c.l.s4 1966171168
        %v2182 = vunpack.c.0.s8 %v2181
        %v2183 = vlaneseq
        %v2184 = vshrl.u32 %v2183, 7
        %v2185 = vsub.s32 %v2182, %v2184
        %v2186 = vrot.slane %v2170, %v2185
        %v2188 = vunpack.c.l.s4 1966171168
        %v2189 = vunpack.c.0.s8 %v2188
        %v2190 = vlaneseq
        %v2191 = vshrl.u32 %v2190, 7
        %v2192 = vsub.s32 %v2189, %v2191
        %v2193 = vrot.slane %v2171, %v2192
        %v2195 = vunpack.c.l.s4 1966171168
        %v2196 = vunpack.c.0.s8 %v2195
        %v2197 = vlaneseq
        %v2198 = vshrl.u32 %v2197, 7
        %v2199 = vsub.s32 %v2196, %v2198
        %v2200 = vrot.slane %v2172, %v2199
        %v2201 = vcombine.low %v2179, %v2186
        %v2202 = vcombine.low %v2193, %v2200
        %v2204 = vunpack.c.l.s4 1966171168
        %v2205 = vunpack.c.0.s8 %v2204
        %v2206 = vlaneseq
        %v2207 = vshrl.u32 %v2206, 7
        %v2208 = vsub.s32 %v2205, %v2207
        %v2209 = vrot.slane %v2201, %v2208
        %v2211 = vunpack.c.l.s4 1966171168
        %v2212 = vunpack.c.0.s8 %v2211
        %v2213 = vlaneseq
        %v2214 = vshrl.u32 %v2213, 7
        %v2215 = vsub.s32 %v2212, %v2214
        %v2216 = vrot.slane %v2202, %v2215
        %v2217 = vcombine.low %v2209, %v2216
        %2219 = vst [vmem:[%s220] sm:$0xff] %v2217
        %s2220 = sand.u32 %s139, 1
        %s2221 = scalar_lea.sflag [#allocation4], %s2220
        %s2222 = sand.u32 %s139, 1
        %s2223 = smul.addr %s2222, 8
        %s2224 = scalar_lea.vmem [#allocation3], %s2223
        // Predicated region
        $region41: #{tpu_custom_call.1} parent=39 // pred_check
          %p2225 = pneg %p149
        $region42: #{tpu_custom_call.1} parent=39 // pred_check_branch
          %2227 = sbr.rel (%p2225) target = $region44
        $region43: #{tpu_custom_call.1} parent=39 // pred_region
          %s2229 = ssub.s32 128, 128
          %2230 = vsyncadd %s2221, %s2229
          %s2231 = smul.addr %s21, 8
          %s2232 = smul.addr %s2231, 16
          %s2233 = scalar_lea.hbm %s5, %s2232
          %s2235 = sshll.u32 %s2224, 4
          %s2236 = int_to_ptr.vmem [resolvable:$true] %s2235
          %2238 = dma.vmem_to_hbm [thread:$0]  %s2236, 128, %s2233, %s2221
        $region44: #{tpu_custom_call.1} parent=39 // pred_fallthru
          _
      $region40: #{tpu_custom_call.1} parent=5 // pred_fallthru
        _
      %p2239 = scmp.le.s32.totalorder 2, %s16
      // Predicated region
      $region45: #{tpu_custom_call.1} parent=5 // pred_check
        %p2240 = pneg %p2239
      $region46: #{tpu_custom_call.1} parent=5 // pred_check_branch
        %2242 = sbr.rel (%p2240) target = $region48
      $region47: #{tpu_custom_call.1} parent=5 // pred_region
        %s2243 = ssub.s32 %s16, 2
        // Predicated region
        $region49: #{tpu_custom_call.1} parent=47 // pred_check
          %p2244 = pneg %p155
        $region50: #{tpu_custom_call.1} parent=47 // pred_check_branch
          %2246 = sbr.rel (%p2244) target = $region52
        $region51: #{tpu_custom_call.1} parent=47 // pred_region
          %s2247 = sand.u32 %s140, 1
          %s2248 = scalar_lea.sflag [#allocation4], %s2247
          %s2249 = sand.u32 %s140, 1
          %s2250 = smul.addr %s2249, 8
          %s2251 = scalar_lea.vmem [#allocation3], %s2250
          %2252 = dma.done %s2248, 128
        $region52: #{tpu_custom_call.1} parent=47 // pred_fallthru
          _
      $region48: #{tpu_custom_call.1} parent=5 // pred_fallthru
        _
    $region6: #{tpu_custom_call.1} parent=1 // loop_footer
      %s20 = sadd.s32 1, %s16
    $region7: #{tpu_custom_call.1} parent=1 // loop_footer_branch
      %15 = sbr.rel target = $region3
    $region8: #{tpu_custom_call.1} parent=1 // loop_exit
      _
    %2253 = vsyncpa [#allocation4], 1
    %s2254 = scalar_lea.sflag [#allocation4], 1
    %2255 = vsyncpa %s2254, 1

</llo_original>
